<compile_context>
chip_gen: v7x
topology: tpu7x:2x2x1
jax: 0.10.0
libtpu: 0.0.40
codegen_flags: <defaults>
</compile_context>

<pallas_src>
import math
import functools

import jax
import jax.numpy as jnp
from jax.experimental import pallas as pl
from jax.experimental.pallas import tpu as pltpu


# ----------------------------------------------------------------------------
# Kernel 1: fused Q/K/V projection (runs once per row tile; scale pre-folded
# into Wq/bq in the wrapper).  bf16 inputs/weights, f32 accumulation, bf16 out.
# ----------------------------------------------------------------------------
def qkv_proj_kernel(q_ref, k_ref, v_ref,
                    wq_ref, bq_ref, wk_ref, bk_ref, wv_ref, bv_ref,
                    qo_ref, ko_ref, vo_ref):
    qo_ref[...] = (jnp.dot(q_ref[...], wq_ref[...],
                           preferred_element_type=jnp.float32)
                   + bq_ref[...]).astype(qo_ref.dtype)
    ko_ref[...] = (jnp.dot(k_ref[...], wk_ref[...],
                           preferred_element_type=jnp.float32)
                   + bk_ref[...]).astype(ko_ref.dtype)
    vo_ref[...] = (jnp.dot(v_ref[...], wv_ref[...],
                           preferred_element_type=jnp.float32)
                   + bv_ref[...]).astype(vo_ref.dtype)


# ----------------------------------------------------------------------------
# Kernel 2: flash attention over pre-projected Q/K/V + fused output projection.
# Grid: (batch [parallel], q-tile [parallel], kv-tile [arbitrary/reduction]).
# ----------------------------------------------------------------------------
def attention_kernel(q_ref, k_ref, v_ref, bias_ref, wo_ref, bo_ref,
                     out_ref,
                     qh_scr, m_scr, l_scr, acc_scr,
                     *, n_heads, d_k):
    ki = pl.program_id(2)
    nk = pl.num_programs(2)

    # ---- init per (batch, q-tile): split the (pre-scaled) Q tile into heads
    #      once, reset the online-softmax accumulators ----
    @pl.when(ki == 0)
    def _init():
        q = q_ref[...]                                           # (tq, D) bf16
        tq = q.shape[0]
        qh_scr[...] = q.reshape(tq, n_heads, d_k).transpose(1, 0, 2)
        m_scr[...] = jnp.full(m_scr.shape, -jnp.inf, m_scr.dtype)
        l_scr[...] = jnp.zeros(l_scr.shape, l_scr.dtype)
        acc_scr[...] = jnp.zeros(acc_scr.shape, acc_scr.dtype)

    # ---- this kv tile (already projected): split into heads ----
    k = k_ref[...]                                               # (tkv, D) bf16
    v = v_ref[...]
    tkv = k.shape[0]
    kh = k.reshape(tkv, n_heads, d_k).transpose(1, 0, 2)         # (H, tkv, d_k)
    vh = v.reshape(tkv, n_heads, d_k).transpose(1, 0, 2)

    # ---- batched-head scores (bf16 MXU, f32 acc); additive mask bias ----
    s = jnp.einsum('hqd,hkd->hqk', qh_scr[...], kh,
                   preferred_element_type=jnp.float32)           # (H, tq, tkv)
    s = s + bias_ref[...][None]                                  # (1,1,tkv) bias

    # ---- online softmax accumulation over kv tiles ----
    m_prev = m_scr[...]
    m_new = jnp.maximum(m_prev, jnp.max(s, axis=-1, keepdims=True))
    alpha = jnp.exp(m_prev - m_new)
    p = jnp.exp(s - m_new)
    l_scr[...] = alpha * l_scr[...] + jnp.sum(p, axis=-1, keepdims=True)
    acc_scr[...] = alpha * acc_scr[...] + jnp.einsum(
        'hqk,hkd->hqd', p.astype(v.dtype), vh,
        preferred_element_type=jnp.float32)
    m_scr[...] = m_new

    # ---- finalize: exact normalize once, merge heads, output projection ----
    @pl.when(ki == nk - 1)
    def _finalize():
        ctx = acc_scr[...] / l_scr[...]                          # (H, tq, d_k) f32
        tq = ctx.shape[1]
        ctx2 = ctx.transpose(1, 0, 2).reshape(tq, n_heads * d_k)
        out = jnp.dot(ctx2.astype(wo_ref.dtype), wo_ref[...],
                      preferred_element_type=jnp.float32) + bo_ref[...]
        out_ref[...] = out.astype(out_ref.dtype)


# ----------------------------------------------------------------------------
# Wrapper
# ----------------------------------------------------------------------------
_TILE = 128  # MXU/lane aligned; fills the v5e 128x128 MXU. Sweep 256 on v6e.


def multi_head_attention(q, k, v, mask, params, *, n_heads):
    B, L, D = q.shape
    assert D % n_heads == 0
    d_k = D // n_heads
    scale = 1.0 / math.sqrt(d_k)
    orig_dtype = q.dtype
    (wq, bq), (wk, bk), (wv, bv), (wo, bo) = params

    # Pad sequence length to a multiple of the tile (padded keys are masked).
    Lp = ((L + _TILE - 1) // _TILE) * _TILE
    pad = Lp - L

    # Additive mask bias: 0 where attended, -1e9 where masked (matches
    # masked_fill(mask.eq(0), -1e9)); padded key positions are masked too.
    bias = jnp.where(mask == 0, -1e9, 0.0).astype(jnp.float32)          # (B, L)
    if pad:
        q = jnp.pad(q, ((0, 0), (0, pad), (0, 0)))
        k = jnp.pad(k, ((0, 0), (0, pad), (0, 0)))
        v = jnp.pad(v, ((0, 0), (0, pad), (0, 0)))
        bias = jnp.pad(bias, ((0, 0), (0, pad)), constant_values=-1e9)
    bias = bias.reshape(B, 1, Lp)

    # bf16 activations / weights (f32 accumulation inside the kernels).
    # Weights pre-transposed to (d_in, d_out); 1/sqrt(d_k) folded into Wq, bq.
    to_bf16 = lambda x: x.astype(jnp.bfloat16)
    q_b, k_b, v_b = to_bf16(q), to_bf16(k), to_bf16(v)
    wq_t = to_bf16(wq.T * scale)
    wk_t, wv_t, wo_t = to_bf16(wk.T), to_bf16(wv.T), to_bf16(wo.T)
    bq_r = (bq * scale).reshape(1, D).astype(jnp.float32)
    bk_r = bk.reshape(1, D).astype(jnp.float32)
    bv_r = bv.reshape(1, D).astype(jnp.float32)
    bo_r = bo.reshape(1, D).astype(jnp.float32)

    # ---------------- QKV projection pass (once per row tile) ----------------
    tr = _TILE
    nr = Lp // tr
    row_spec = pl.BlockSpec((None, tr, D), lambda b, r: (b, r, 0))
    w_spec_p = pl.BlockSpec((D, D), lambda b, r: (0, 0))
    b_spec_p = pl.BlockSpec((1, D), lambda b, r: (0, 0))

    qp, kp, vp = pl.pallas_call(
        qkv_proj_kernel,
        out_shape=(jax.ShapeDtypeStruct((B, Lp, D), jnp.bfloat16),
                   jax.ShapeDtypeStruct((B, Lp, D), jnp.bfloat16),
                   jax.ShapeDtypeStruct((B, Lp, D), jnp.bfloat16)),
        grid=(B, nr),
        in_specs=[row_spec, row_spec, row_spec,
                  w_spec_p, b_spec_p, w_spec_p, b_spec_p, w_spec_p, b_spec_p],
        out_specs=[row_spec, row_spec, row_spec],
        compiler_params=pltpu.CompilerParams(
            dimension_semantics=("parallel", "parallel")),
    )(q_b, k_b, v_b, wq_t, bq_r, wk_t, bk_r, wv_t, bv_r)

    # ---------------------- flash attention + out-proj -----------------------
    tq = tkv = _TILE
    nq, nkv = Lp // tq, Lp // tkv

    q_spec = pl.BlockSpec((None, tq, D), lambda b, qi, ki: (b, qi, 0))
    kv_spec = pl.BlockSpec((None, tkv, D), lambda b, qi, ki: (b, ki, 0))
    bias_spec = pl.BlockSpec((None, 1, tkv), lambda b, qi, ki: (b, 0, ki))
    wo_spec = pl.BlockSpec((D, D), lambda b, qi, ki: (0, 0))
    bo_spec = pl.BlockSpec((1, D), lambda b, qi, ki: (0, 0))
    out_spec = pl.BlockSpec((None, tq, D), lambda b, qi, ki: (b, qi, 0))

    kernel = functools.partial(attention_kernel, n_heads=n_heads, d_k=d_k)

    out = pl.pallas_call(
        kernel,
        out_shape=jax.ShapeDtypeStruct((B, Lp, D), orig_dtype),
        grid=(B, nq, nkv),
        in_specs=[q_spec, kv_spec, kv_spec, bias_spec, wo_spec, bo_spec],
        out_specs=out_spec,
        scratch_shapes=[
            pltpu.VMEM((n_heads, tq, d_k), jnp.bfloat16),  # pre-scaled Q heads
            pltpu.VMEM((n_heads, tq, 1), jnp.float32),     # running row max
            pltpu.VMEM((n_heads, tq, 1), jnp.float32),     # running denominator
            pltpu.VMEM((n_heads, tq, d_k), jnp.float32),   # running numerator
        ],
        compiler_params=pltpu.CompilerParams(
            dimension_semantics=("parallel", "parallel", "arbitrary")),
    )(qp, kp, vp, bias, wo_t, bo_r)

    return out[:, :L, :]


# ----------------------------------------------------------------------------
# Pure-JAX f32 reference mirroring the PyTorch forward (dropout = identity).
# ----------------------------------------------------------------------------
def reference_mha(q, k, v, mask, params, *, n_heads):
    B, L, D = q.shape
    d_k = D // n_heads
    (wq, bq), (wk, bk), (wv, bv), (wo, bo) = params

    def proj(x, w, b):
        return x @ w.T + b

    def split(x):  # (B, L, D) -> (B, H, L, d_k)
        return x.reshape(B, L, n_heads, d_k).transpose(0, 2, 1, 3)

    Q, K, V = split(proj(q, wq, bq)), split(proj(k, wk, bk)), split(proj(v, wv, bv))
    scores = jnp.einsum("bhqd,bhkd->bhqk", Q, K) / math.sqrt(d_k)
    m = mask[:, None, None, :]
    scores = jnp.where(m == 0, -1e9, scores)
    p = jax.nn.softmax(scores, axis=-1)
    x = jnp.einsum("bhqk,bhkd->bhqd", p, V)
    x = x.transpose(0, 2, 1, 3).reshape(B, L, D)
    return x @ wo.T + bo


if __name__ == "__main__":
    B, L, D, H = 2, 8, 32, 4

    key = jax.random.PRNGKey(0)
    keys = jax.random.split(key, 12)

    # Deterministic "nn.Linear"-style init (uniform, bound = 1/sqrt(fan_in)).
    bound = 1.0 / math.sqrt(D)

    def lin(kw, kb):
        w = jax.random.uniform(kw, (D, D), jnp.float32, -bound, bound)
        b = jax.random.uniform(kb, (D,), jnp.float32, -bound, bound)
        return w, b

    params = (lin(keys[0], keys[1]), lin(keys[2], keys[3]),
              lin(keys[4], keys[5]), lin(keys[6], keys[7]))

    q = jax.random.normal(keys[8], (B, L, D), jnp.float32)
    k = jax.random.normal(keys[9], (B, L, D), jnp.float32)
    v = jax.random.normal(keys[10], (B, L, D), jnp.float32)
    # Byte mask (B, L): 1 = attend, 0 = masked; mask the last 2 keys of batch 1.
    mask = jnp.ones((B, L), jnp.int32).at[1, L - 2:].set(0)

    out = multi_head_attention(q, k, v, mask, params, n_heads=H)
    out = jax.block_until_ready(out)

    ref = reference_mha(q, k, v, mask, params, n_heads=H)
    assert out.shape == (B, L, D)
    # Tolerance reflects bf16 MXU inputs (weights/activations/probabilities);
    # all accumulation and softmax state is f32, normalization is exact, so
    # structural errors (masking, head split, scale, padding) would be >> this.
    assert jnp.allclose(out, ref, atol=3e-2, rtol=3e-2), "mismatch vs reference"

    print("KERNEL_OK")
</pallas_src>

<mosaic_0001>
module attributes {stable_mosaic.version = 11 : i64} {
  func.func @qkv_proj_kernel(%arg0: i32, %arg1: i32, %arg2: memref<1x128x32xbf16, #tpu.memory_space<vmem>>, %arg3: memref<1x128x32xbf16, #tpu.memory_space<vmem>>, %arg4: memref<1x128x32xbf16, #tpu.memory_space<vmem>>, %arg5: memref<32x32xbf16, #tpu.memory_space<vmem>>, %arg6: memref<1x32xf32, #tpu.memory_space<vmem>>, %arg7: memref<32x32xbf16, #tpu.memory_space<vmem>>, %arg8: memref<1x32xf32, #tpu.memory_space<vmem>>, %arg9: memref<32x32xbf16, #tpu.memory_space<vmem>>, %arg10: memref<1x32xf32, #tpu.memory_space<vmem>>, %arg11: memref<1x128x32xbf16, #tpu.memory_space<vmem>>, %arg12: memref<1x128x32xbf16, #tpu.memory_space<vmem>>, %arg13: memref<1x128x32xbf16, #tpu.memory_space<vmem>>) attributes {dimension_semantics = [#tpu.dimension_semantics<parallel>, #tpu.dimension_semantics<parallel>], iteration_bounds = array<i64: 2, 1>, scalar_prefetch = 0 : i64, scratch_operands = 0 : i64, tpu.core_type = #tpu.core_type<tc>, window_params = [{transform_indices = @transform_0, window_bounds = array<i64: 1, 128, 32>}, {transform_indices = @transform_1, window_bounds = array<i64: 1, 128, 32>}, {transform_indices = @transform_2, window_bounds = array<i64: 1, 128, 32>}, {pipeline_mode = #tpu.pipeline_mode<synchronous>, transform_indices = @transform_3, window_bounds = array<i64: 32, 32>}, {pipeline_mode = #tpu.pipeline_mode<synchronous>, transform_indices = @transform_4, window_bounds = array<i64: 1, 32>}, {pipeline_mode = #tpu.pipeline_mode<synchronous>, transform_indices = @transform_5, window_bounds = array<i64: 32, 32>}, {pipeline_mode = #tpu.pipeline_mode<synchronous>, transform_indices = @transform_6, window_bounds = array<i64: 1, 32>}, {pipeline_mode = #tpu.pipeline_mode<synchronous>, transform_indices = @transform_7, window_bounds = array<i64: 32, 32>}, {pipeline_mode = #tpu.pipeline_mode<synchronous>, transform_indices = @transform_8, window_bounds = array<i64: 1, 32>}, {transform_indices = @transform_9, window_bounds = array<i64: 1, 128, 32>}, {transform_indices = @transform_10, window_bounds = array<i64: 1, 128, 32>}, {transform_indices = @transform_11, window_bounds = array<i64: 1, 128, 32>}]} {
    %c0 = arith.constant 0 : index
    %c0_0 = arith.constant 0 : index
    %c0_1 = arith.constant 0 : index
    %0 = vector.load %arg2[%c0, %c0_0, %c0_1] : memref<1x128x32xbf16, #tpu.memory_space<vmem>>, vector<1x128x32xbf16>
    %1 = vector.shape_cast %0 : vector<1x128x32xbf16> to vector<128x32xbf16>
    %c0_2 = arith.constant 0 : index
    %c0_3 = arith.constant 0 : index
    %2 = vector.load %arg5[%c0_2, %c0_3] : memref<32x32xbf16, #tpu.memory_space<vmem>>, vector<32x32xbf16>
    %cst = arith.constant dense<0.000000e+00> : vector<128x32xf32>
    %3 = tpu.matmul %1, %2, %cst {dimension_numbers = #tpu.dot_dimension_numbers<[1], [0], [0], [1], [0, 0, 1, 1], [], []>} : vector<128x32xbf16>, vector<32x32xbf16>, vector<128x32xf32> -> vector<128x32xf32>
    %c0_4 = arith.constant 0 : index
    %c0_5 = arith.constant 0 : index
    %4 = vector.load %arg6[%c0_4, %c0_5] : memref<1x32xf32, #tpu.memory_space<vmem>>, vector<1x32xf32>
    %5 = vector.broadcast %4 : vector<1x32xf32> to vector<128x32xf32>
    %6 = arith.addf %3, %5 : vector<128x32xf32>
    %7 = arith.truncf %6 : vector<128x32xf32> to vector<128x32xbf16>
    %c0_6 = arith.constant 0 : index
    %c0_7 = arith.constant 0 : index
    %c0_8 = arith.constant 0 : index
    %8 = vector.load %arg11[%c0_6, %c0_7, %c0_8] : memref<1x128x32xbf16, #tpu.memory_space<vmem>>, vector<1x128x32xbf16>
    %9 = vector.shape_cast %8 : vector<1x128x32xbf16> to vector<128x32xbf16>
    %10 = vector.shape_cast %7 : vector<128x32xbf16> to vector<1x128x32xbf16>
    tpu.vector_store %arg11[%c0_6, %c0_7, %c0_8], %10 {strides = array<i32>} : memref<1x128x32xbf16, #tpu.memory_space<vmem>>, vector<1x128x32xbf16>,
    %c0_9 = arith.constant 0 : index
    %c0_10 = arith.constant 0 : index
    %c0_11 = arith.constant 0 : index
    %11 = vector.load %arg3[%c0_9, %c0_10, %c0_11] : memref<1x128x32xbf16, #tpu.memory_space<vmem>>, vector<1x128x32xbf16>
    %12 = vector.shape_cast %11 : vector<1x128x32xbf16> to vector<128x32xbf16>
    %c0_12 = arith.constant 0 : index
    %c0_13 = arith.constant 0 : index
    %13 = vector.load %arg7[%c0_12, %c0_13] : memref<32x32xbf16, #tpu.memory_space<vmem>>, vector<32x32xbf16>
    %cst_14 = arith.constant dense<0.000000e+00> : vector<128x32xf32>
    %14 = tpu.matmul %12, %13, %cst_14 {dimension_numbers = #tpu.dot_dimension_numbers<[1], [0], [0], [1], [0, 0, 1, 1], [], []>} : vector<128x32xbf16>, vector<32x32xbf16>, vector<128x32xf32> -> vector<128x32xf32>
    %c0_15 = arith.constant 0 : index
    %c0_16 = arith.constant 0 : index
    %15 = vector.load %arg8[%c0_15, %c0_16] : memref<1x32xf32, #tpu.memory_space<vmem>>, vector<1x32xf32>
    %16 = vector.broadcast %15 : vector<1x32xf32> to vector<128x32xf32>
    %17 = arith.addf %14, %16 : vector<128x32xf32>
    %18 = arith.truncf %17 : vector<128x32xf32> to vector<128x32xbf16>
    %c0_17 = arith.constant 0 : index
    %c0_18 = arith.constant 0 : index
    %c0_19 = arith.constant 0 : index
    %19 = vector.load %arg12[%c0_17, %c0_18, %c0_19] : memref<1x128x32xbf16, #tpu.memory_space<vmem>>, vector<1x128x32xbf16>
    %20 = vector.shape_cast %19 : vector<1x128x32xbf16> to vector<128x32xbf16>
    %21 = vector.shape_cast %18 : vector<128x32xbf16> to vector<1x128x32xbf16>
    tpu.vector_store %arg12[%c0_17, %c0_18, %c0_19], %21 {strides = array<i32>} : memref<1x128x32xbf16, #tpu.memory_space<vmem>>, vector<1x128x32xbf16>,
    %c0_20 = arith.constant 0 : index
    %c0_21 = arith.constant 0 : index
    %c0_22 = arith.constant 0 : index
    %22 = vector.load %arg4[%c0_20, %c0_21, %c0_22] : memref<1x128x32xbf16, #tpu.memory_space<vmem>>, vector<1x128x32xbf16>
    %23 = vector.shape_cast %22 : vector<1x128x32xbf16> to vector<128x32xbf16>
    %c0_23 = arith.constant 0 : index
    %c0_24 = arith.constant 0 : index
    %24 = vector.load %arg9[%c0_23, %c0_24] : memref<32x32xbf16, #tpu.memory_space<vmem>>, vector<32x32xbf16>
    %cst_25 = arith.constant dense<0.000000e+00> : vector<128x32xf32>
    %25 = tpu.matmul %23, %24, %cst_25 {dimension_numbers = #tpu.dot_dimension_numbers<[1], [0], [0], [1], [0, 0, 1, 1], [], []>} : vector<128x32xbf16>, vector<32x32xbf16>, vector<128x32xf32> -> vector<128x32xf32>
    %c0_26 = arith.constant 0 : index
    %c0_27 = arith.constant 0 : index
    %26 = vector.load %arg10[%c0_26, %c0_27] : memref<1x32xf32, #tpu.memory_space<vmem>>, vector<1x32xf32>
    %27 = vector.broadcast %26 : vector<1x32xf32> to vector<128x32xf32>
    %28 = arith.addf %25, %27 : vector<128x32xf32>
    %29 = arith.truncf %28 : vector<128x32xf32> to vector<128x32xbf16>
    %c0_28 = arith.constant 0 : index
    %c0_29 = arith.constant 0 : index
    %c0_30 = arith.constant 0 : index
    %30 = vector.load %arg13[%c0_28, %c0_29, %c0_30] : memref<1x128x32xbf16, #tpu.memory_space<vmem>>, vector<1x128x32xbf16>
    %31 = vector.shape_cast %30 : vector<1x128x32xbf16> to vector<128x32xbf16>
    %32 = vector.shape_cast %29 : vector<128x32xbf16> to vector<1x128x32xbf16>
    tpu.vector_store %arg13[%c0_28, %c0_29, %c0_30], %32 {strides = array<i32>} : memref<1x128x32xbf16, #tpu.memory_space<vmem>>, vector<1x128x32xbf16>,
    return
  }
  func.func @transform_0(%arg0: i32, %arg1: i32) -> (i32, i32, i32) {
    %c0_i32 = arith.constant 0 : i32
    %c0_i32_0 = arith.constant 0 : i32
    return %arg0, %arg1, %c0_i32 : i32, i32, i32
  }
  func.func @transform_1(%arg0: i32, %arg1: i32) -> (i32, i32, i32) {
    %c0_i32 = arith.constant 0 : i32
    %c0_i32_0 = arith.constant 0 : i32
    return %arg0, %arg1, %c0_i32 : i32, i32, i32
  }
  func.func @transform_2(%arg0: i32, %arg1: i32) -> (i32, i32, i32) {
    %c0_i32 = arith.constant 0 : i32
    %c0_i32_0 = arith.constant 0 : i32
    return %arg0, %arg1, %c0_i32 : i32, i32, i32
  }
  func.func @transform_3(%arg0: i32, %arg1: i32) -> (i32, i32) {
    %c0_i32 = arith.constant 0 : i32
    %c0_i32_0 = arith.constant 0 : i32
    %c0_i32_1 = arith.constant 0 : i32
    return %c0_i32, %c0_i32_0 : i32, i32
  }
  func.func @transform_4(%arg0: i32, %arg1: i32) -> (i32, i32) {
    %c0_i32 = arith.constant 0 : i32
    %c0_i32_0 = arith.constant 0 : i32
    %c0_i32_1 = arith.constant 0 : i32
    return %c0_i32, %c0_i32_0 : i32, i32
  }
  func.func @transform_5(%arg0: i32, %arg1: i32) -> (i32, i32) {
    %c0_i32 = arith.constant 0 : i32
    %c0_i32_0 = arith.constant 0 : i32
    %c0_i32_1 = arith.constant 0 : i32
    return %c0_i32, %c0_i32_0 : i32, i32
  }
  func.func @transform_6(%arg0: i32, %arg1: i32) -> (i32, i32) {
    %c0_i32 = arith.constant 0 : i32
    %c0_i32_0 = arith.constant 0 : i32
    %c0_i32_1 = arith.constant 0 : i32
    return %c0_i32, %c0_i32_0 : i32, i32
  }
  func.func @transform_7(%arg0: i32, %arg1: i32) -> (i32, i32) {
    %c0_i32 = arith.constant 0 : i32
    %c0_i32_0 = arith.constant 0 : i32
    %c0_i32_1 = arith.constant 0 : i32
    return %c0_i32, %c0_i32_0 : i32, i32
  }
  func.func @transform_8(%arg0: i32, %arg1: i32) -> (i32, i32) {
    %c0_i32 = arith.constant 0 : i32
    %c0_i32_0 = arith.constant 0 : i32
    %c0_i32_1 = arith.constant 0 : i32
    return %c0_i32, %c0_i32_0 : i32, i32
  }
  func.func @transform_9(%arg0: i32, %arg1: i32) -> (i32, i32, i32) {
    %c0_i32 = arith.constant 0 : i32
    %c0_i32_0 = arith.constant 0 : i32
    return %arg0, %arg1, %c0_i32 : i32, i32, i32
  }
  func.func @transform_10(%arg0: i32, %arg1: i32) -> (i32, i32, i32) {
    %c0_i32 = arith.constant 0 : i32
    %c0_i32_0 = arith.constant 0 : i32
    return %arg0, %arg1, %c0_i32 : i32, i32, i32
  }
  func.func @transform_11(%arg0: i32, %arg1: i32) -> (i32, i32, i32) {
    %c0_i32 = arith.constant 0 : i32
    %c0_i32_0 = arith.constant 0 : i32
    return %arg0, %arg1, %c0_i32 : i32, i32, i32
  }
}

</mosaic_0001>

<llo_original>
// kernel: tpu_custom_call.1
$region0: #{tpu_custom_call.1}
  #allocation0 [shape = 'u32[]', space=smem, size = 0x4, offset = 0x4, fixed_abs, tag = 'smem constant byte address 0x4 - core index']
  #allocation1 [shape = 'u32[144,128]{1,0:T(1,128)}', space=vmem, size = 0x12000, scoped, tag = 'internal scratch']
  %s0 = inlined_call_operand.vmem [shape: bf16[2,128,32], index: 0, kind: input, shape index: {}]
  %s1 = inlined_call_operand.vmem [shape: bf16[2,128,32], index: 1, kind: input, shape index: {}]
  %s2 = inlined_call_operand.vmem [shape: bf16[2,128,32], index: 2, kind: input, shape index: {}]
  %s3 = inlined_call_operand.vmem [shape: bf16[32,32], index: 3, kind: input, shape index: {}]
  %s4 = inlined_call_operand.vmem [shape: f32[1,32], index: 4, kind: input, shape index: {}]
  %s5 = inlined_call_operand.vmem [shape: bf16[32,32], index: 5, kind: input, shape index: {}]
  %s6 = inlined_call_operand.vmem [shape: f32[1,32], index: 6, kind: input, shape index: {}]
  %s7 = inlined_call_operand.vmem [shape: bf16[32,32], index: 7, kind: input, shape index: {}]
  %s8 = inlined_call_operand.vmem [shape: f32[1,32], index: 8, kind: input, shape index: {}]
  %s9 = inlined_call_operand.vmem [shape: bf16[2,128,32], index: 9, kind: output, shape index: {0}]
  %s10 = inlined_call_operand.vmem [shape: bf16[2,128,32], index: 10, kind: output, shape index: {1}]
  %s11 = inlined_call_operand.vmem [shape: bf16[2,128,32], index: 11, kind: output, shape index: {2}]
  %12 = xla_tuple %s9, %s10, %s11
  %s13 = sld [smem:[#allocation0]]
  $region85: #{tpu_custom_call.1} parent=0
    _
  %s15 = ssub.s32 1, %s13
  %s16 = scalar_select 0, %s15, %s13
  loop: start=0, step=1, limit=4
  $region2: #{tpu_custom_call.1} parent=0 // loop_pre_header
    _
  $region3: #{tpu_custom_call.1} parent=0 // loop_header
    %s18 = sphi 0, %s22
    %p19 = scmp.ge.s32.totalorder %s18, 4
    %s25 = sphi 0, %s37
    %s26 = sphi 0, %s33
    %s27 = sphi 0, %s25
    %s28 = sphi 0, %s26
    %s29 = sphi 0, %s27
    %s30 = sphi 0, %s28
    %s42 = sphi 0, %s44
    %s45 = sphi 0, %s42
    %s46 = sphi 0, %s45
    %s62 = sphi 0, %s46
    %s70 = sphi 0, %s72
    %s73 = sphi 0, %s70
    %s74 = sphi 0, %s73
    %s90 = sphi 0, %s74
    %s98 = sphi 0, %s100
    %s101 = sphi 0, %s98
    %s102 = sphi 0, %s101
    %s118 = sphi 0, %s102
    %s122 = sphi 0, %s122
    %s124 = sphi 0, %s122
    %s125 = sphi 0, %s124
    %s139 = sphi 0, %s125
    %s143 = sphi 0, %s143
    %s145 = sphi 0, %s143
    %s146 = sphi 0, %s145
    %s160 = sphi 0, %s146
    %s164 = sphi 0, %s164
    %s166 = sphi 0, %s164
    %s167 = sphi 0, %s166
    %s181 = sphi 0, %s167
    %s185 = sphi 0, %s185
    %s187 = sphi 0, %s185
    %s188 = sphi 0, %s187
    %s202 = sphi 0, %s188
    %s206 = sphi 0, %s206
    %s208 = sphi 0, %s206
    %s209 = sphi 0, %s208
    %s223 = sphi 0, %s209
    %s227 = sphi 0, %s227
    %s229 = sphi 0, %s227
    %s230 = sphi 0, %s229
    %s244 = sphi 0, %s230
    %s252 = sphi 0, %s254
    %s255 = sphi 0, %s252
    %s256 = sphi 0, %s255
    %s272 = sphi 0, %s256
    %s280 = sphi 0, %s282
    %s283 = sphi 0, %s280
    %s284 = sphi 0, %s283
    %s300 = sphi 0, %s284
    %s308 = sphi 0, %s310
    %s311 = sphi 0, %s308
    %s312 = sphi 0, %s311
    %s328 = sphi 0, %s312
  $region4: #{tpu_custom_call.1} parent=0 // loop_header_branch
    %21 = sbr.rel (%p19) target = $region8
  $region5: #{tpu_custom_call.1} parent=0 // loop_body
    %s23 = ssub.s32 %s18, 1
    %s24 = ssub.s32 %s18, 2
    %s31 = sadd.s32 1, %s26
    %p32 = scmp.ge.s32.totalorder %s31, 1
    %s33 = scalar_select %p32, 0, %s31
    %s34 = sadd.s32 1, %s25
    %s35 = scalar_select %p32, %s34, %s25
    %p36 = scmp.ge.s32.totalorder %s35, 2
    %s37 = scalar_select %p36, 0, %s35
    %s38 = ssub.s32 %s25, %s37
    %s39 = ssub.s32 %s26, %s33
    %s40 = sor.u32 %s38, %s39
    %p41 = scmp.eq.s32.totalorder %s40, 0
    %s43 = sadd.s32 %s42, 1
    %s44 = scalar_select %p41, %s42, %s43
    %p47 = pneg %p41
    %p48 = scmp.eq.s32.totalorder %s18, 1
    %p49 = por %p47, %p48
    %p50 = scmp.ne.s32.totalorder %s42, %s45
    %p51 = scmp.eq.s32.totalorder %s18, 0
    %p52 = por %p50, %p51
    %p53 = scmp.ne.s32.totalorder %s42, %s45
    %p54 = scmp.eq.s32.totalorder %s23, 1
    %p55 = por %p53, %p54
    %p56 = scmp.ne.s32.totalorder %s45, %s46
    %p57 = scmp.eq.s32.totalorder %s23, 0
    %p58 = por %p56, %p57
    %p59 = scmp.ne.s32.totalorder %s45, %s46
    %p60 = scmp.eq.s32.totalorder %s24, 1
    %p61 = por %p59, %p60
    %p63 = scmp.ne.s32.totalorder %s46, %s62
    %p64 = scmp.eq.s32.totalorder %s24, 0
    %p65 = por %p63, %p64
    %s66 = ssub.s32 %s25, %s37
    %s67 = ssub.s32 %s26, %s33
    %s68 = sor.u32 %s66, %s67
    %p69 = scmp.eq.s32.totalorder %s68, 0
    %s71 = sadd.s32 %s70, 1
    %s72 = scalar_select %p69, %s70, %s71
    %p75 = pneg %p69
    %p76 = scmp.eq.s32.totalorder %s18, 1
    %p77 = por %p75, %p76
    %p78 = scmp.ne.s32.totalorder %s70, %s73
    %p79 = scmp.eq.s32.totalorder %s18, 0
    %p80 = por %p78, %p79
    %p81 = scmp.ne.s32.totalorder %s70, %s73
    %p82 = scmp.eq.s32.totalorder %s23, 1
    %p83 = por %p81, %p82
    %p84 = scmp.ne.s32.totalorder %s73, %s74
    %p85 = scmp.eq.s32.totalorder %s23, 0
    %p86 = por %p84, %p85
    %p87 = scmp.ne.s32.totalorder %s73, %s74
    %p88 = scmp.eq.s32.totalorder %s24, 1
    %p89 = por %p87, %p88
    %p91 = scmp.ne.s32.totalorder %s74, %s90
    %p92 = scmp.eq.s32.totalorder %s24, 0
    %p93 = por %p91, %p92
    %s94 = ssub.s32 %s25, %s37
    %s95 = ssub.s32 %s26, %s33
    %s96 = sor.u32 %s94, %s95
    %p97 = scmp.eq.s32.totalorder %s96, 0
    %s99 = sadd.s32 %s98, 1
    %s100 = scalar_select %p97, %s98, %s99
    %p103 = pneg %p97
    %p104 = scmp.eq.s32.totalorder %s18, 1
    %p105 = por %p103, %p104
    %p106 = scmp.ne.s32.totalorder %s98, %s101
    %p107 = scmp.eq.s32.totalorder %s18, 0
    %p108 = por %p106, %p107
    %p109 = scmp.ne.s32.totalorder %s98, %s101
    %p110 = scmp.eq.s32.totalorder %s23, 1
    %p111 = por %p109, %p110
    %p112 = scmp.ne.s32.totalorder %s101, %s102
    %p113 = scmp.eq.s32.totalorder %s23, 0
    %p114 = por %p112, %p113
    %p115 = scmp.ne.s32.totalorder %s101, %s102
    %p116 = scmp.eq.s32.totalorder %s24, 1
    %p117 = por %p115, %p116
    %p119 = scmp.ne.s32.totalorder %s102, %s118
    %p120 = scmp.eq.s32.totalorder %s24, 0
    %p121 = por %p119, %p120
    %s123 = sadd.s32 %s122, 1
    %p126 = scmp.eq.s32.totalorder %s18, 1
    %p127 = scmp.ne.s32.totalorder %s122, %s124
    %p128 = scmp.eq.s32.totalorder %s18, 0
    %p129 = por %p127, %p128
    %p130 = scmp.ne.s32.totalorder %s122, %s124
    %p131 = scmp.eq.s32.totalorder %s23, 1
    %p132 = por %p130, %p131
    %p133 = scmp.ne.s32.totalorder %s124, %s125
    %p134 = scmp.eq.s32.totalorder %s23, 0
    %p135 = por %p133, %p134
    %p136 = scmp.ne.s32.totalorder %s124, %s125
    %p137 = scmp.eq.s32.totalorder %s24, 1
    %p138 = por %p136, %p137
    %p140 = scmp.ne.s32.totalorder %s125, %s139
    %p141 = scmp.eq.s32.totalorder %s24, 0
    %p142 = por %p140, %p141
    %s144 = sadd.s32 %s143, 1
    %p147 = scmp.eq.s32.totalorder %s18, 1
    %p148 = scmp.ne.s32.totalorder %s143, %s145
    %p149 = scmp.eq.s32.totalorder %s18, 0
    %p150 = por %p148, %p149
    %p151 = scmp.ne.s32.totalorder %s143, %s145
    %p152 = scmp.eq.s32.totalorder %s23, 1
    %p153 = por %p151, %p152
    %p154 = scmp.ne.s32.totalorder %s145, %s146
    %p155 = scmp.eq.s32.totalorder %s23, 0
    %p156 = por %p154, %p155
    %p157 = scmp.ne.s32.totalorder %s145, %s146
    %p158 = scmp.eq.s32.totalorder %s24, 1
    %p159 = por %p157, %p158
    %p161 = scmp.ne.s32.totalorder %s146, %s160
    %p162 = scmp.eq.s32.totalorder %s24, 0
    %p163 = por %p161, %p162
    %s165 = sadd.s32 %s164, 1
    %p168 = scmp.eq.s32.totalorder %s18, 1
    %p169 = scmp.ne.s32.totalorder %s164, %s166
    %p170 = scmp.eq.s32.totalorder %s18, 0
    %p171 = por %p169, %p170
    %p172 = scmp.ne.s32.totalorder %s164, %s166
    %p173 = scmp.eq.s32.totalorder %s23, 1
    %p174 = por %p172, %p173
    %p175 = scmp.ne.s32.totalorder %s166, %s167
    %p176 = scmp.eq.s32.totalorder %s23, 0
    %p177 = por %p175, %p176
    %p178 = scmp.ne.s32.totalorder %s166, %s167
    %p179 = scmp.eq.s32.totalorder %s24, 1
    %p180 = por %p178, %p179
    %p182 = scmp.ne.s32.totalorder %s167, %s181
    %p183 = scmp.eq.s32.totalorder %s24, 0
    %p184 = por %p182, %p183
    %s186 = sadd.s32 %s185, 1
    %p189 = scmp.eq.s32.totalorder %s18, 1
    %p190 = scmp.ne.s32.totalorder %s185, %s187
    %p191 = scmp.eq.s32.totalorder %s18, 0
    %p192 = por %p190, %p191
    %p193 = scmp.ne.s32.totalorder %s185, %s187
    %p194 = scmp.eq.s32.totalorder %s23, 1
    %p195 = por %p193, %p194
    %p196 = scmp.ne.s32.totalorder %s187, %s188
    %p197 = scmp.eq.s32.totalorder %s23, 0
    %p198 = por %p196, %p197
    %p199 = scmp.ne.s32.totalorder %s187, %s188
    %p200 = scmp.eq.s32.totalorder %s24, 1
    %p201 = por %p199, %p200
    %p203 = scmp.ne.s32.totalorder %s188, %s202
    %p204 = scmp.eq.s32.totalorder %s24, 0
    %p205 = por %p203, %p204
    %s207 = sadd.s32 %s206, 1
    %p210 = scmp.eq.s32.totalorder %s18, 1
    %p211 = scmp.ne.s32.totalorder %s206, %s208
    %p212 = scmp.eq.s32.totalorder %s18, 0
    %p213 = por %p211, %p212
    %p214 = scmp.ne.s32.totalorder %s206, %s208
    %p215 = scmp.eq.s32.totalorder %s23, 1
    %p216 = por %p214, %p215
    %p217 = scmp.ne.s32.totalorder %s208, %s209
    %p218 = scmp.eq.s32.totalorder %s23, 0
    %p219 = por %p217, %p218
    %p220 = scmp.ne.s32.totalorder %s208, %s209
    %p221 = scmp.eq.s32.totalorder %s24, 1
    %p222 = por %p220, %p221
    %p224 = scmp.ne.s32.totalorder %s209, %s223
    %p225 = scmp.eq.s32.totalorder %s24, 0
    %p226 = por %p224, %p225
    %s228 = sadd.s32 %s227, 1
    %p231 = scmp.eq.s32.totalorder %s18, 1
    %p232 = scmp.ne.s32.totalorder %s227, %s229
    %p233 = scmp.eq.s32.totalorder %s18, 0
    %p234 = por %p232, %p233
    %p235 = scmp.ne.s32.totalorder %s227, %s229
    %p236 = scmp.eq.s32.totalorder %s23, 1
    %p237 = por %p235, %p236
    %p238 = scmp.ne.s32.totalorder %s229, %s230
    %p239 = scmp.eq.s32.totalorder %s23, 0
    %p240 = por %p238, %p239
    %p241 = scmp.ne.s32.totalorder %s229, %s230
    %p242 = scmp.eq.s32.totalorder %s24, 1
    %p243 = por %p241, %p242
    %p245 = scmp.ne.s32.totalorder %s230, %s244
    %p246 = scmp.eq.s32.totalorder %s24, 0
    %p247 = por %p245, %p246
    %s248 = ssub.s32 %s25, %s37
    %s249 = ssub.s32 %s26, %s33
    %s250 = sor.u32 %s248, %s249
    %p251 = scmp.eq.s32.totalorder %s250, 0
    %s253 = sadd.s32 %s252, 1
    %s254 = scalar_select %p251, %s252, %s253
    %p257 = pneg %p251
    %p258 = scmp.eq.s32.totalorder %s18, 1
    %p259 = por %p257, %p258
    %p260 = scmp.ne.s32.totalorder %s252, %s255
    %p261 = scmp.eq.s32.totalorder %s18, 0
    %p262 = por %p260, %p261
    %p263 = scmp.ne.s32.totalorder %s252, %s255
    %p264 = scmp.eq.s32.totalorder %s23, 1
    %p265 = por %p263, %p264
    %p266 = scmp.ne.s32.totalorder %s255, %s256
    %p267 = scmp.eq.s32.totalorder %s23, 0
    %p268 = por %p266, %p267
    %p269 = scmp.ne.s32.totalorder %s255, %s256
    %p270 = scmp.eq.s32.totalorder %s24, 1
    %p271 = por %p269, %p270
    %p273 = scmp.ne.s32.totalorder %s256, %s272
    %p274 = scmp.eq.s32.totalorder %s24, 0
    %p275 = por %p273, %p274
    %s276 = ssub.s32 %s25, %s37
    %s277 = ssub.s32 %s26, %s33
    %s278 = sor.u32 %s276, %s277
    %p279 = scmp.eq.s32.totalorder %s278, 0
    %s281 = sadd.s32 %s280, 1
    %s282 = scalar_select %p279, %s280, %s281
    %p285 = pneg %p279
    %p286 = scmp.eq.s32.totalorder %s18, 1
    %p287 = por %p285, %p286
    %p288 = scmp.ne.s32.totalorder %s280, %s283
    %p289 = scmp.eq.s32.totalorder %s18, 0
    %p290 = por %p288, %p289
    %p291 = scmp.ne.s32.totalorder %s280, %s283
    %p292 = scmp.eq.s32.totalorder %s23, 1
    %p293 = por %p291, %p292
    %p294 = scmp.ne.s32.totalorder %s283, %s284
    %p295 = scmp.eq.s32.totalorder %s23, 0
    %p296 = por %p294, %p295
    %p297 = scmp.ne.s32.totalorder %s283, %s284
    %p298 = scmp.eq.s32.totalorder %s24, 1
    %p299 = por %p297, %p298
    %p301 = scmp.ne.s32.totalorder %s284, %s300
    %p302 = scmp.eq.s32.totalorder %s24, 0
    %p303 = por %p301, %p302
    %s304 = ssub.s32 %s25, %s37
    %s305 = ssub.s32 %s26, %s33
    %s306 = sor.u32 %s304, %s305
    %p307 = scmp.eq.s32.totalorder %s306, 0
    %s309 = sadd.s32 %s308, 1
    %s310 = scalar_select %p307, %s308, %s309
    %p313 = pneg %p307
    %p314 = scmp.eq.s32.totalorder %s18, 1
    %p315 = por %p313, %p314
    %p316 = scmp.ne.s32.totalorder %s308, %s311
    %p317 = scmp.eq.s32.totalorder %s18, 0
    %p318 = por %p316, %p317
    %p319 = scmp.ne.s32.totalorder %s308, %s311
    %p320 = scmp.eq.s32.totalorder %s23, 1
    %p321 = por %p319, %p320
    %p322 = scmp.ne.s32.totalorder %s311, %s312
    %p323 = scmp.eq.s32.totalorder %s23, 0
    %p324 = por %p322, %p323
    %p325 = scmp.ne.s32.totalorder %s311, %s312
    %p326 = scmp.eq.s32.totalorder %s24, 1
    %p327 = por %p325, %p326
    %p329 = scmp.ne.s32.totalorder %s312, %s328
    %p330 = scmp.eq.s32.totalorder %s24, 0
    %p331 = por %p329, %p330
    %p332 = scmp.le.s32.totalorder 1, %s18
    %p333 = scmp.lt.s32.totalorder %s18, 3
    %p334 = pnand %p332, %p333
    %p335 = pneg %p334
    // Predicated region
    $region9: #{tpu_custom_call.1} parent=5 // pred_check
      _
    $region10: #{tpu_custom_call.1} parent=5 // pred_check_branch
      %337 = sbr.rel (%p334) target = $region12
    $region11: #{tpu_custom_call.1} parent=5 // pred_region
      %s338 = ssub.s32 %s18, 1
      // Predicated region
      $region13: #{tpu_custom_call.1} parent=11 // pred_check
        %p339 = pneg %p135
      $region14: #{tpu_custom_call.1} parent=11 // pred_check_branch
        %341 = sbr.rel (%p339) target = $region16
      $region15: #{tpu_custom_call.1} parent=11 // pred_region
        _
      $region16: #{tpu_custom_call.1} parent=11 // pred_fallthru
        _
      // Predicated region
      $region17: #{tpu_custom_call.1} parent=11 // pred_check
        %p342 = pneg %p156
      $region18: #{tpu_custom_call.1} parent=11 // pred_check_branch
        %344 = sbr.rel (%p342) target = $region20
      $region19: #{tpu_custom_call.1} parent=11 // pred_region
        _
      $region20: #{tpu_custom_call.1} parent=11 // pred_fallthru
        _
      // Predicated region
      $region21: #{tpu_custom_call.1} parent=11 // pred_check
        %p345 = pneg %p177
      $region22: #{tpu_custom_call.1} parent=11 // pred_check_branch
        %347 = sbr.rel (%p345) target = $region24
      $region23: #{tpu_custom_call.1} parent=11 // pred_region
        _
      $region24: #{tpu_custom_call.1} parent=11 // pred_fallthru
        _
      // Predicated region
      $region25: #{tpu_custom_call.1} parent=11 // pred_check
        %p348 = pneg %p198
      $region26: #{tpu_custom_call.1} parent=11 // pred_check_branch
        %350 = sbr.rel (%p348) target = $region28
      $region27: #{tpu_custom_call.1} parent=11 // pred_region
        _
      $region28: #{tpu_custom_call.1} parent=11 // pred_fallthru
        _
      // Predicated region
      $region29: #{tpu_custom_call.1} parent=11 // pred_check
        %p351 = pneg %p219
      $region30: #{tpu_custom_call.1} parent=11 // pred_check_branch
        %353 = sbr.rel (%p351) target = $region32
      $region31: #{tpu_custom_call.1} parent=11 // pred_region
        _
      $region32: #{tpu_custom_call.1} parent=11 // pred_fallthru
        _
      // Predicated region
      $region33: #{tpu_custom_call.1} parent=11 // pred_check
        %p354 = pneg %p240
      $region34: #{tpu_custom_call.1} parent=11 // pred_check_branch
        %356 = sbr.rel (%p354) target = $region36
      $region35: #{tpu_custom_call.1} parent=11 // pred_region
        _
      $region36: #{tpu_custom_call.1} parent=11 // pred_fallthru
        _
    $region12: #{tpu_custom_call.1} parent=5 // pred_fallthru
      _
    %p357 = scmp.lt.s32.totalorder %s18, 2
    // Predicated region
    $region37: #{tpu_custom_call.1} parent=5 // pred_check
      %p358 = pneg %p357
    $region38: #{tpu_custom_call.1} parent=5 // pred_check_branch
      %360 = sbr.rel (%p358) target = $region40
    $region39: #{tpu_custom_call.1} parent=5 // pred_region
      // Predicated region
      $region41: #{tpu_custom_call.1} parent=39 // pred_check
        %p361 = pneg %p52
      $region42: #{tpu_custom_call.1} parent=39 // pred_check_branch
        %363 = sbr.rel (%p361) target = $region44
      $region43: #{tpu_custom_call.1} parent=39 // pred_region
        %s364 = smul.u32 16, %s26
        %p365 = scmp.lt.s32.totalorder %s25, 1
        %s366 = scalar_select %p365, %s25, 1
        %p367 = scmp.lt.s32.totalorder %s364, 15
        %s368 = scalar_select %p367, %s364, 15
        %s369 = smul.addr %s366, 16
        %s370 = sadd.s32 %s368, %s369
        %s371 = smul.addr %s370, 4
        %s372 = scalar_lea.vmem %s0, %s371
        %s373 = smul.u32 16, %s26
      $region44: #{tpu_custom_call.1} parent=39 // pred_fallthru
        _
      // Predicated region
      $region45: #{tpu_custom_call.1} parent=39 // pred_check
        %p374 = pneg %p80
      $region46: #{tpu_custom_call.1} parent=39 // pred_check_branch
        %376 = sbr.rel (%p374) target = $region48
      $region47: #{tpu_custom_call.1} parent=39 // pred_region
        %s377 = smul.u32 16, %s26
        %p378 = scmp.lt.s32.totalorder %s25, 1
        %s379 = scalar_select %p378, %s25, 1
        %p380 = scmp.lt.s32.totalorder %s377, 15
        %s381 = scalar_select %p380, %s377, 15
        %s382 = smul.addr %s379, 16
        %s383 = sadd.s32 %s381, %s382
        %s384 = smul.addr %s383, 4
        %s385 = scalar_lea.vmem %s1, %s384
        %s386 = smul.u32 16, %s26
      $region48: #{tpu_custom_call.1} parent=39 // pred_fallthru
        _
      // Predicated region
      $region49: #{tpu_custom_call.1} parent=39 // pred_check
        %p387 = pneg %p108
      $region50: #{tpu_custom_call.1} parent=39 // pred_check_branch
        %389 = sbr.rel (%p387) target = $region52
      $region51: #{tpu_custom_call.1} parent=39 // pred_region
        %s390 = smul.u32 16, %s26
        %p391 = scmp.lt.s32.totalorder %s25, 1
        %s392 = scalar_select %p391, %s25, 1
        %p393 = scmp.lt.s32.totalorder %s390, 15
        %s394 = scalar_select %p393, %s390, 15
        %s395 = smul.addr %s392, 16
        %s396 = sadd.s32 %s394, %s395
        %s397 = smul.addr %s396, 4
        %s398 = scalar_lea.vmem %s2, %s397
        %s399 = smul.u32 16, %s26
      $region52: #{tpu_custom_call.1} parent=39 // pred_fallthru
        _
    $region40: #{tpu_custom_call.1} parent=5 // pred_fallthru
      _
    %p400 = scmp.le.s32.totalorder 1, %s18
    %p401 = scmp.lt.s32.totalorder %s18, 3
    %p402 = pnand %p400, %p401
    %p403 = pneg %p402
    // Predicated region
    $region53: #{tpu_custom_call.1} parent=5 // pred_check
      _
    $region54: #{tpu_custom_call.1} parent=5 // pred_check_branch
      %405 = sbr.rel (%p402) target = $region56
    $region55: #{tpu_custom_call.1} parent=5 // pred_region
      %s406 = ssub.s32 %s18, 1
      %s407 = smul.u32 16, %s28
      %p408 = scmp.lt.s32.totalorder %s27, 1
      %s409 = scalar_select %p408, %s27, 1
      %p410 = scmp.lt.s32.totalorder %s407, 15
      %s411 = scalar_select %p410, %s407, 15
      %s412 = smul.addr %s409, 16
      %s413 = sadd.s32 %s411, %s412
      %s414 = smul.addr %s413, 4
      %s415 = scalar_lea.vmem %s0, %s414
      %p416 = pneg %p58
      %p417 = pneg %p55
      %s418 = smul.u32 16, %s28
      %p419 = scmp.lt.s32.totalorder %s27, 1
      %s420 = scalar_select %p419, %s27, 1
      %p421 = scmp.lt.s32.totalorder %s418, 15
      %s422 = scalar_select %p421, %s418, 15
      %s423 = smul.addr %s420, 16
      %s424 = sadd.s32 %s422, %s423
      %s425 = smul.addr %s424, 4
      %s426 = scalar_lea.vmem %s1, %s425
      %p427 = pneg %p86
      %p428 = pneg %p83
      %s429 = smul.u32 16, %s28
      %p430 = scmp.lt.s32.totalorder %s27, 1
      %s431 = scalar_select %p430, %s27, 1
      %p432 = scmp.lt.s32.totalorder %s429, 15
      %s433 = scalar_select %p432, %s429, 15
      %s434 = smul.addr %s431, 16
      %s435 = sadd.s32 %s433, %s434
      %s436 = smul.addr %s435, 4
      %s437 = scalar_lea.vmem %s2, %s436
      %p438 = pneg %p114
      %p439 = pneg %p111
      %p440 = pneg %p135
      %p441 = pneg %p132
      %p442 = pneg %p156
      %p443 = pneg %p153
      %p444 = pneg %p177
      %p445 = pneg %p174
      %p446 = pneg %p198
      %p447 = pneg %p195
      %p448 = pneg %p219
      %p449 = pneg %p216
      %p450 = pneg %p240
      %p451 = pneg %p237
      %p452 = pneg %p268
      %p453 = pneg %p265
      %s454 = smul.u32 16, %s28
      %p455 = scmp.lt.s32.totalorder %s27, 1
      %s456 = scalar_select %p455, %s27, 1
      %p457 = scmp.lt.s32.totalorder %s454, 15
      %s458 = scalar_select %p457, %s454, 15
      %s459 = smul.addr %s456, 16
      %s460 = sadd.s32 %s458, %s459
      %s461 = smul.addr %s460, 4
      %s462 = scalar_lea.vmem %s9, %s461
      %p463 = pneg %p296
      %p464 = pneg %p293
      %s465 = smul.u32 16, %s28
      %p466 = scmp.lt.s32.totalorder %s27, 1
      %s467 = scalar_select %p466, %s27, 1
      %p468 = scmp.lt.s32.totalorder %s465, 15
      %s469 = scalar_select %p468, %s465, 15
      %s470 = smul.addr %s467, 16
      %s471 = sadd.s32 %s469, %s470
      %s472 = smul.addr %s471, 4
      %s473 = scalar_lea.vmem %s10, %s472
      %p474 = pneg %p324
      %p475 = pneg %p321
      %s476 = smul.u32 16, %s28
      %p477 = scmp.lt.s32.totalorder %s27, 1
      %s478 = scalar_select %p477, %s27, 1
      %p479 = scmp.lt.s32.totalorder %s476, 15
      %s480 = scalar_select %p479, %s476, 15
      %s481 = smul.addr %s478, 16
      %s482 = sadd.s32 %s480, %s481
      %s483 = smul.addr %s482, 4
      %s484 = scalar_lea.vmem %s11, %s483
      %s485 = smul.u32 16, %s28
      %p486 = scmp.lt.s32.totalorder %s27, 1
      %s487 = scalar_select %p486, %s27, 1
      %p488 = scmp.lt.s32.totalorder %s485, 15
      %s489 = scalar_select %p488, %s485, 15
      %s490 = smul.addr %s487, 16
      %s491 = sadd.s32 %s489, %s490
      %s492 = smul.addr %s491, 4
      %s493 = scalar_lea.vmem %s0, %s492
      %s494 = smul.u32 16, %s28
      %s495 = smul.u32 16, %s28
      %p496 = scmp.lt.s32.totalorder %s27, 1
      %s497 = scalar_select %p496, %s27, 1
      %p498 = scmp.lt.s32.totalorder %s495, 15
      %s499 = scalar_select %p498, %s495, 15
      %s500 = smul.addr %s497, 16
      %s501 = sadd.s32 %s499, %s500
      %s502 = smul.addr %s501, 4
      %s503 = scalar_lea.vmem %s1, %s502
      %s504 = smul.u32 16, %s28
      %s505 = smul.u32 16, %s28
      %p506 = scmp.lt.s32.totalorder %s27, 1
      %s507 = scalar_select %p506, %s27, 1
      %p508 = scmp.lt.s32.totalorder %s505, 15
      %s509 = scalar_select %p508, %s505, 15
      %s510 = smul.addr %s507, 16
      %s511 = sadd.s32 %s509, %s510
      %s512 = smul.addr %s511, 4
      %s513 = scalar_lea.vmem %s2, %s512
      %s514 = smul.u32 16, %s28
      %s515 = smul.u32 16, %s28
      %p516 = scmp.lt.s32.totalorder %s27, 1
      %s517 = scalar_select %p516, %s27, 1
      %p518 = scmp.lt.s32.totalorder %s515, 15
      %s519 = scalar_select %p518, %s515, 15
      %s520 = smul.addr %s517, 16
      %s521 = sadd.s32 %s519, %s520
      %s522 = smul.addr %s521, 4
      %s523 = scalar_lea.vmem %s9, %s522
      %s524 = smul.u32 16, %s28
      %s525 = smul.u32 16, %s28
      %p526 = scmp.lt.s32.totalorder %s27, 1
      %s527 = scalar_select %p526, %s27, 1
      %p528 = scmp.lt.s32.totalorder %s525, 15
      %s529 = scalar_select %p528, %s525, 15
      %s530 = smul.addr %s527, 16
      %s531 = sadd.s32 %s529, %s530
      %s532 = smul.addr %s531, 4
      %s533 = scalar_lea.vmem %s10, %s532
      %s534 = smul.u32 16, %s28
      %s535 = smul.u32 16, %s28
      %p536 = scmp.lt.s32.totalorder %s27, 1
      %s537 = scalar_select %p536, %s27, 1
      %p538 = scmp.lt.s32.totalorder %s535, 15
      %s539 = scalar_select %p538, %s535, 15
      %s540 = smul.addr %s537, 16
      %s541 = sadd.s32 %s539, %s540
      %s542 = smul.addr %s541, 4
      %s543 = scalar_lea.vmem %s11, %s542
      %s544 = smul.u32 16, %s28
      %v546 = vld [vmem:[%s493] sm:$0xf]
      %v547 = vld [vmem:[%s493 + $0x4] sm:$0xf]
      %v548 = vld [vmem:[%s493 + $0x8] sm:$0xf]
      %v549 = vld [vmem:[%s493 + $0xc] sm:$0xf]
      %v550 = vld [vmem:[%s493 + $0x10] sm:$0xf]
      %v551 = vld [vmem:[%s493 + $0x14] sm:$0xf]
      %v552 = vld [vmem:[%s493 + $0x18] sm:$0xf]
      %v553 = vld [vmem:[%s493 + $0x1c] sm:$0xf]
      %v554 = vld [vmem:[%s493 + $0x20] sm:$0xf]
      %v555 = vld [vmem:[%s493 + $0x24] sm:$0xf]
      %v556 = vld [vmem:[%s493 + $0x28] sm:$0xf]
      %v557 = vld [vmem:[%s493 + $0x2c] sm:$0xf]
      %v558 = vld [vmem:[%s493 + $0x30] sm:$0xf]
      %v559 = vld [vmem:[%s493 + $0x34] sm:$0xf]
      %v560 = vld [vmem:[%s493 + $0x38] sm:$0xf]
      %v561 = vld [vmem:[%s493 + $0x3c] sm:$0xf]
      %v562 = vld [vmem:[%s3] sm:$0xf]
      %v563 = vld [vmem:[%s3 + $0x4] sm:$0xf]
      %v564 = vld [vmem:[%s3 + $0x8] sm:$0xf]
      %v565 = vld [vmem:[%s3 + $0xc] sm:$0xf]
      %v566 = vld [vmem:[%s4] sm:$0x1]
      %v568 = vlaneseq
      %v569 = vshrl.u32 %v568, 7
      %v570 = vsub.s32 0, %v569
      %v571 = vrot.slane %v566, %v570
      %v589 = vunpack.c.l.b16 %v546
      %v590 = vunpack.c.l.b16 %v547
      %v591 = vunpack.c.l.b16 %v548
      %v592 = vunpack.c.l.b16 %v549
      %v593 = vunpack.c.l.b16 %v550
      %v594 = vunpack.c.l.b16 %v551
      %v595 = vunpack.c.l.b16 %v552
      %v596 = vunpack.c.l.b16 %v553
      %v597 = vunpack.c.l.b16 %v554
      %v598 = vunpack.c.l.b16 %v555
      %v599 = vunpack.c.l.b16 %v556
      %v600 = vunpack.c.l.b16 %v557
      %v601 = vunpack.c.l.b16 %v558
      %v602 = vunpack.c.l.b16 %v559
      %v603 = vunpack.c.l.b16 %v560
      %v604 = vunpack.c.l.b16 %v561
      %v605 = vpack.c.b16 %v590, %v589
      %v606 = vpack.c.b16 %v592, %v591
      %v607 = vpack.c.b16 %v594, %v593
      %v608 = vpack.c.b16 %v596, %v595
      %v609 = vpack.c.b16 %v598, %v597
      %v610 = vpack.c.b16 %v600, %v599
      %v611 = vpack.c.b16 %v602, %v601
      %v612 = vpack.c.b16 %v604, %v603
      %v617 = vunpack.c.l.b16 %v562
      %v618 = vunpack.c.l.b16 %v563
      %v619 = vunpack.c.l.b16 %v564
      %v620 = vunpack.c.l.b16 %v565
      %v621 = vpack.c.b16 %v618, %v617
      %v622 = vpack.c.b16 %v620, %v619
      %vm625 = vcmask 261120
      %v627 = vsel %vm625, %v605, 0
      %v630 = vsel %vm625, %v606, 0
      %v633 = vsel %vm625, %v607, 0
      %v636 = vsel %vm625, %v608, 0
      %v639 = vsel %vm625, %v609, 0
      %v642 = vsel %vm625, %v610, 0
      %v645 = vsel %vm625, %v611, 0
      %v648 = vsel %vm625, %v612, 0
      %650 = vmatprep.subr.bf16.mxu0 0
      %651 = vmatpush1.bf16.msra.mxu0 %v621
      %652 = vmatprep.subr.bf16.mxu0 0
      %653 = vmatpush1.bf16.msra.mxu0 %v622
      %654 = vmatprep.subr.bf16.mxu0 0
      %655 = vmatpush1.bf16.msra.mxu0 0
      %656 = vmatprep.subr.bf16.mxu0 0
      %657 = vmatpush1.bf16.msra.mxu0 0
      %658 = vmatprep.subr.bf16.mxu0 0
      %659 = vmatpush1.bf16.msra.mxu0 0
      %660 = vmatprep.subr.bf16.mxu0 0
      %661 = vmatpush1.bf16.msra.mxu0 0
      %662 = vmatprep.subr.bf16.mxu0 0
      %663 = vmatpush1.bf16.msra.mxu0 0
      %664 = vmatprep.subr.bf16.mxu0 0
      %665 = vmatpush1.bf16.msra.mxu0 0
      %666 = vmatprep.subr.bf16.mxu0 0
      %667 = vmatpush1.bf16.msra.mxu0 0
      %668 = vmatprep.subr.bf16.mxu0 0
      %669 = vmatpush1.bf16.msra.mxu0 0
      %670 = vmatprep.subr.bf16.mxu0 0
      %671 = vmatpush1.bf16.msra.mxu0 0
      %672 = vmatprep.subr.bf16.mxu0 0
      %673 = vmatpush1.bf16.msra.mxu0 0
      %674 = vmatprep.subr.bf16.mxu0 0
      %675 = vmatpush1.bf16.msra.mxu0 0
      %676 = vmatprep.subr.bf16.mxu0 0
      %677 = vmatpush1.bf16.msra.mxu0 0
      %678 = vmatprep.subr.bf16.mxu0 0
      %679 = vmatpush1.bf16.msra.mxu0 0
      %680 = vmatprep.subr.bf16.mxu0 0
      %681 = vmatpush1.bf16.msra.mxu0 0
      %682 = vmatprep.mubr.bf16.mxu0 0
      %683 = vmatmul.mubr.bf16.gmra.mrb[0].mxu0 %v627
      %v684 = vpop.f32.mrb[0].mxu0
      %v685 = vadd.f32 %v571, %v684
      %v686 = vpop.f32.mrb[0].mxu0
      %v687 = vpop.f32.mrb[0].mxu0
      %v688 = vadd.f32 %v571, %v687
      %v689 = vpop.f32.mrb[0].mxu0
      %690 = vmatprep.mubr.bf16.mxu0 0
      %691 = vmatmul.mubr.bf16.gmra.mrb[0].mxu0 %v630
      %v692 = vpop.f32.mrb[0].mxu0
      %v693 = vadd.f32 %v571, %v692
      %v694 = vpop.f32.mrb[0].mxu0
      %v695 = vpop.f32.mrb[0].mxu0
      %v696 = vadd.f32 %v571, %v695
      %v697 = vpop.f32.mrb[0].mxu0
      %698 = vmatprep.mubr.bf16.mxu0 0
      %699 = vmatmul.mubr.bf16.gmra.mrb[0].mxu0 %v633
      %v700 = vpop.f32.mrb[0].mxu0
      %v701 = vadd.f32 %v571, %v700
      %v702 = vpop.f32.mrb[0].mxu0
      %v703 = vpop.f32.mrb[0].mxu0
      %v704 = vadd.f32 %v571, %v703
      %v705 = vpop.f32.mrb[0].mxu0
      %706 = vmatprep.mubr.bf16.mxu0 0
      %707 = vmatmul.mubr.bf16.gmra.mrb[0].mxu0 %v636
      %v708 = vpop.f32.mrb[0].mxu0
      %v709 = vadd.f32 %v571, %v708
      %v710 = vpop.f32.mrb[0].mxu0
      %v711 = vpop.f32.mrb[0].mxu0
      %v712 = vadd.f32 %v571, %v711
      %v713 = vpop.f32.mrb[0].mxu0
      %714 = vmatprep.mubr.bf16.mxu0 0
      %715 = vmatmul.mubr.bf16.gmra.mrb[0].mxu0 %v639
      %v716 = vpop.f32.mrb[0].mxu0
      %v717 = vadd.f32 %v571, %v716
      %v718 = vpop.f32.mrb[0].mxu0
      %v719 = vpop.f32.mrb[0].mxu0
      %v720 = vadd.f32 %v571, %v719
      %v721 = vpop.f32.mrb[0].mxu0
      %722 = vmatprep.mubr.bf16.mxu0 0
      %723 = vmatmul.mubr.bf16.gmra.mrb[0].mxu0 %v642
      %v724 = vpop.f32.mrb[0].mxu0
      %v725 = vadd.f32 %v571, %v724
      %v726 = vpop.f32.mrb[0].mxu0
      %v727 = vpop.f32.mrb[0].mxu0
      %v728 = vadd.f32 %v571, %v727
      %v729 = vpop.f32.mrb[0].mxu0
      %730 = vmatprep.mubr.bf16.mxu0 0
      %731 = vmatmul.mubr.bf16.gmra.mrb[0].mxu0 %v645
      %v732 = vpop.f32.mrb[0].mxu0
      %v733 = vadd.f32 %v571, %v732
      %v734 = vpop.f32.mrb[0].mxu0
      %v735 = vpop.f32.mrb[0].mxu0
      %v736 = vadd.f32 %v571, %v735
      %v737 = vpop.f32.mrb[0].mxu0
      %738 = vmatprep.mubr.bf16.mxu0 0
      %739 = vmatmul.mubr.bf16.gmra.mrb[0].mxu0 %v648
      %v740 = vpop.f32.mrb[0].mxu0
      %v741 = vadd.f32 %v571, %v740
      %v742 = vpop.f32.mrb[0].mxu0
      %v743 = vpop.f32.mrb[0].mxu0
      %v744 = vadd.f32 %v571, %v743
      %v745 = vpop.f32.mrb[0].mxu0
      %746 = vdwg.mxu0
      %v747 = vpack.c.bf16 %v688, %v685
      %v748 = vpack.c.bf16 %v696, %v693
      %v749 = vpack.c.bf16 %v704, %v701
      %v750 = vpack.c.bf16 %v712, %v709
      %v751 = vpack.c.bf16 %v720, %v717
      %v752 = vpack.c.bf16 %v728, %v725
      %v753 = vpack.c.bf16 %v736, %v733
      %v754 = vpack.c.bf16 %v744, %v741
      %v763 = vunpack.c.l.b16 %v747
      %v764 = vunpack.c.h.b16 %v747
      %v765 = vunpack.c.l.b16 %v748
      %v766 = vunpack.c.h.b16 %v748
      %v767 = vunpack.c.l.b16 %v749
      %v768 = vunpack.c.h.b16 %v749
      %v769 = vunpack.c.l.b16 %v750
      %v770 = vunpack.c.h.b16 %v750
      %v771 = vunpack.c.l.b16 %v751
      %v772 = vunpack.c.h.b16 %v751
      %v773 = vunpack.c.l.b16 %v752
      %v774 = vunpack.c.h.b16 %v752
      %v775 = vunpack.c.l.b16 %v753
      %v776 = vunpack.c.h.b16 %v753
      %v777 = vunpack.c.l.b16 %v754
      %v778 = vunpack.c.h.b16 %v754
      %v779 = vpack.c.b16 %v763, %v763
      %v780 = vpack.c.b16 %v764, %v764
      %v781 = vpack.c.b16 %v765, %v765
      %v782 = vpack.c.b16 %v766, %v766
      %v783 = vpack.c.b16 %v767, %v767
      %v784 = vpack.c.b16 %v768, %v768
      %v785 = vpack.c.b16 %v769, %v769
      %v786 = vpack.c.b16 %v770, %v770
      %v787 = vpack.c.b16 %v771, %v771
      %v788 = vpack.c.b16 %v772, %v772
      %v789 = vpack.c.b16 %v773, %v773
      %v790 = vpack.c.b16 %v774, %v774
      %v791 = vpack.c.b16 %v775, %v775
      %v792 = vpack.c.b16 %v776, %v776
      %v793 = vpack.c.b16 %v777, %v777
      %v794 = vpack.c.b16 %v778, %v778
      %vm811 = vcmask 257024
      %812 = vst.msk [vmem:[%s523] sm:$0xf] %vm811, %v779
      %813 = vst.msk [vmem:[%s523 + $0x4] sm:$0xf] %vm811, %v780
      %814 = vst.msk [vmem:[%s523 + $0x8] sm:$0xf] %vm811, %v781
      %815 = vst.msk [vmem:[%s523 + $0xc] sm:$0xf] %vm811, %v782
      %816 = vst.msk [vmem:[%s523 + $0x10] sm:$0xf] %vm811, %v783
      %817 = vst.msk [vmem:[%s523 + $0x14] sm:$0xf] %vm811, %v784
      %818 = vst.msk [vmem:[%s523 + $0x18] sm:$0xf] %vm811, %v785
      %819 = vst.msk [vmem:[%s523 + $0x1c] sm:$0xf] %vm811, %v786
      %820 = vst.msk [vmem:[%s523 + $0x20] sm:$0xf] %vm811, %v787
      %821 = vst.msk [vmem:[%s523 + $0x24] sm:$0xf] %vm811, %v788
      %822 = vst.msk [vmem:[%s523 + $0x28] sm:$0xf] %vm811, %v789
      %823 = vst.msk [vmem:[%s523 + $0x2c] sm:$0xf] %vm811, %v790
      %824 = vst.msk [vmem:[%s523 + $0x30] sm:$0xf] %vm811, %v791
      %825 = vst.msk [vmem:[%s523 + $0x34] sm:$0xf] %vm811, %v792
      %826 = vst.msk [vmem:[%s523 + $0x38] sm:$0xf] %vm811, %v793
      %827 = vst.msk [vmem:[%s523 + $0x3c] sm:$0xf] %vm811, %v794
      %v828 = vld [vmem:[%s503] sm:$0xf]
      %v829 = vld [vmem:[%s503 + $0x4] sm:$0xf]
      %v830 = vld [vmem:[%s503 + $0x8] sm:$0xf]
      %v831 = vld [vmem:[%s503 + $0xc] sm:$0xf]
      %v832 = vld [vmem:[%s503 + $0x10] sm:$0xf]
      %v833 = vld [vmem:[%s503 + $0x14] sm:$0xf]
      %v834 = vld [vmem:[%s503 + $0x18] sm:$0xf]
      %v835 = vld [vmem:[%s503 + $0x1c] sm:$0xf]
      %v836 = vld [vmem:[%s503 + $0x20] sm:$0xf]
      %v837 = vld [vmem:[%s503 + $0x24] sm:$0xf]
      %v838 = vld [vmem:[%s503 + $0x28] sm:$0xf]
      %v839 = vld [vmem:[%s503 + $0x2c] sm:$0xf]
      %v840 = vld [vmem:[%s503 + $0x30] sm:$0xf]
      %v841 = vld [vmem:[%s503 + $0x34] sm:$0xf]
      %v842 = vld [vmem:[%s503 + $0x38] sm:$0xf]
      %v843 = vld [vmem:[%s503 + $0x3c] sm:$0xf]
      %v844 = vld [vmem:[%s5] sm:$0xf]
      %v845 = vld [vmem:[%s5 + $0x4] sm:$0xf]
      %v846 = vld [vmem:[%s5 + $0x8] sm:$0xf]
      %v847 = vld [vmem:[%s5 + $0xc] sm:$0xf]
      %v848 = vld [vmem:[%s6] sm:$0x1]
      %v850 = vlaneseq
      %v851 = vshrl.u32 %v850, 7
      %v852 = vsub.s32 0, %v851
      %v853 = vrot.slane %v848, %v852
      %v871 = vunpack.c.l.b16 %v828
      %v872 = vunpack.c.l.b16 %v829
      %v873 = vunpack.c.l.b16 %v830
      %v874 = vunpack.c.l.b16 %v831
      %v875 = vunpack.c.l.b16 %v832
      %v876 = vunpack.c.l.b16 %v833
      %v877 = vunpack.c.l.b16 %v834
      %v878 = vunpack.c.l.b16 %v835
      %v879 = vunpack.c.l.b16 %v836
      %v880 = vunpack.c.l.b16 %v837
      %v881 = vunpack.c.l.b16 %v838
      %v882 = vunpack.c.l.b16 %v839
      %v883 = vunpack.c.l.b16 %v840
      %v884 = vunpack.c.l.b16 %v841
      %v885 = vunpack.c.l.b16 %v842
      %v886 = vunpack.c.l.b16 %v843
      %v887 = vpack.c.b16 %v872, %v871
      %v888 = vpack.c.b16 %v874, %v873
      %v889 = vpack.c.b16 %v876, %v875
      %v890 = vpack.c.b16 %v878, %v877
      %v891 = vpack.c.b16 %v880, %v879
      %v892 = vpack.c.b16 %v882, %v881
      %v893 = vpack.c.b16 %v884, %v883
      %v894 = vpack.c.b16 %v886, %v885
      %v899 = vunpack.c.l.b16 %v844
      %v900 = vunpack.c.l.b16 %v845
      %v901 = vunpack.c.l.b16 %v846
      %v902 = vunpack.c.l.b16 %v847
      %v903 = vpack.c.b16 %v900, %v899
      %v904 = vpack.c.b16 %v902, %v901
      %v908 = vsel %vm625, %v887, 0
      %v911 = vsel %vm625, %v888, 0
      %v914 = vsel %vm625, %v889, 0
      %v917 = vsel %vm625, %v890, 0
      %v920 = vsel %vm625, %v891, 0
      %v923 = vsel %vm625, %v892, 0
      %v926 = vsel %vm625, %v893, 0
      %v929 = vsel %vm625, %v894, 0
      %931 = vmatprep.subr.bf16.mxu0 0
      %932 = vmatpush1.bf16.msra.mxu0 %v903
      %933 = vmatprep.subr.bf16.mxu0 0
      %934 = vmatpush1.bf16.msra.mxu0 %v904
      %935 = vmatprep.subr.bf16.mxu0 0
      %936 = vmatpush1.bf16.msra.mxu0 0
      %937 = vmatprep.subr.bf16.mxu0 0
      %938 = vmatpush1.bf16.msra.mxu0 0
      %939 = vmatprep.subr.bf16.mxu0 0
      %940 = vmatpush1.bf16.msra.mxu0 0
      %941 = vmatprep.subr.bf16.mxu0 0
      %942 = vmatpush1.bf16.msra.mxu0 0
      %943 = vmatprep.subr.bf16.mxu0 0
      %944 = vmatpush1.bf16.msra.mxu0 0
      %945 = vmatprep.subr.bf16.mxu0 0
      %946 = vmatpush1.bf16.msra.mxu0 0
      %947 = vmatprep.subr.bf16.mxu0 0
      %948 = vmatpush1.bf16.msra.mxu0 0
      %949 = vmatprep.subr.bf16.mxu0 0
      %950 = vmatpush1.bf16.msra.mxu0 0
      %951 = vmatprep.subr.bf16.mxu0 0
      %952 = vmatpush1.bf16.msra.mxu0 0
      %953 = vmatprep.subr.bf16.mxu0 0
      %954 = vmatpush1.bf16.msra.mxu0 0
      %955 = vmatprep.subr.bf16.mxu0 0
      %956 = vmatpush1.bf16.msra.mxu0 0
      %957 = vmatprep.subr.bf16.mxu0 0
      %958 = vmatpush1.bf16.msra.mxu0 0
      %959 = vmatprep.subr.bf16.mxu0 0
      %960 = vmatpush1.bf16.msra.mxu0 0
      %961 = vmatprep.subr.bf16.mxu0 0
      %962 = vmatpush1.bf16.msra.mxu0 0
      %963 = vmatprep.mubr.bf16.mxu0 0
      %964 = vmatmul.mubr.bf16.gmra.mrb[0].mxu0 %v908
      %v965 = vpop.f32.mrb[0].mxu0
      %v966 = vadd.f32 %v853, %v965
      %v967 = vpop.f32.mrb[0].mxu0
      %v968 = vpop.f32.mrb[0].mxu0
      %v969 = vadd.f32 %v853, %v968
      %v970 = vpop.f32.mrb[0].mxu0
      %971 = vmatprep.mubr.bf16.mxu0 0
      %972 = vmatmul.mubr.bf16.gmra.mrb[0].mxu0 %v911
      %v973 = vpop.f32.mrb[0].mxu0
      %v974 = vadd.f32 %v853, %v973
      %v975 = vpop.f32.mrb[0].mxu0
      %v976 = vpop.f32.mrb[0].mxu0
      %v977 = vadd.f32 %v853, %v976
      %v978 = vpop.f32.mrb[0].mxu0
      %979 = vmatprep.mubr.bf16.mxu0 0
      %980 = vmatmul.mubr.bf16.gmra.mrb[0].mxu0 %v914
      %v981 = vpop.f32.mrb[0].mxu0
      %v982 = vadd.f32 %v853, %v981
      %v983 = vpop.f32.mrb[0].mxu0
      %v984 = vpop.f32.mrb[0].mxu0
      %v985 = vadd.f32 %v853, %v984
      %v986 = vpop.f32.mrb[0].mxu0
      %987 = vmatprep.mubr.bf16.mxu0 0
      %988 = vmatmul.mubr.bf16.gmra.mrb[0].mxu0 %v917
      %v989 = vpop.f32.mrb[0].mxu0
      %v990 = vadd.f32 %v853, %v989
      %v991 = vpop.f32.mrb[0].mxu0
      %v992 = vpop.f32.mrb[0].mxu0
      %v993 = vadd.f32 %v853, %v992
      %v994 = vpop.f32.mrb[0].mxu0
      %995 = vmatprep.mubr.bf16.mxu0 0
      %996 = vmatmul.mubr.bf16.gmra.mrb[0].mxu0 %v920
      %v997 = vpop.f32.mrb[0].mxu0
      %v998 = vadd.f32 %v853, %v997
      %v999 = vpop.f32.mrb[0].mxu0
      %v1000 = vpop.f32.mrb[0].mxu0
      %v1001 = vadd.f32 %v853, %v1000
      %v1002 = vpop.f32.mrb[0].mxu0
      %1003 = vmatprep.mubr.bf16.mxu0 0
      %1004 = vmatmul.mubr.bf16.gmra.mrb[0].mxu0 %v923
      %v1005 = vpop.f32.mrb[0].mxu0
      %v1006 = vadd.f32 %v853, %v1005
      %v1007 = vpop.f32.mrb[0].mxu0
      %v1008 = vpop.f32.mrb[0].mxu0
      %v1009 = vadd.f32 %v853, %v1008
      %v1010 = vpop.f32.mrb[0].mxu0
      %1011 = vmatprep.mubr.bf16.mxu0 0
      %1012 = vmatmul.mubr.bf16.gmra.mrb[0].mxu0 %v926
      %v1013 = vpop.f32.mrb[0].mxu0
      %v1014 = vadd.f32 %v853, %v1013
      %v1015 = vpop.f32.mrb[0].mxu0
      %v1016 = vpop.f32.mrb[0].mxu0
      %v1017 = vadd.f32 %v853, %v1016
      %v1018 = vpop.f32.mrb[0].mxu0
      %1019 = vmatprep.mubr.bf16.mxu0 0
      %1020 = vmatmul.mubr.bf16.gmra.mrb[0].mxu0 %v929
      %v1021 = vpop.f32.mrb[0].mxu0
      %v1022 = vadd.f32 %v853, %v1021
      %v1023 = vpop.f32.mrb[0].mxu0
      %v1024 = vpop.f32.mrb[0].mxu0
      %v1025 = vadd.f32 %v853, %v1024
      %v1026 = vpop.f32.mrb[0].mxu0
      %1027 = vdwg.mxu0
      %v1028 = vpack.c.bf16 %v969, %v966
      %v1029 = vpack.c.bf16 %v977, %v974
      %v1030 = vpack.c.bf16 %v985, %v982
      %v1031 = vpack.c.bf16 %v993, %v990
      %v1032 = vpack.c.bf16 %v1001, %v998
      %v1033 = vpack.c.bf16 %v1009, %v1006
      %v1034 = vpack.c.bf16 %v1017, %v1014
      %v1035 = vpack.c.bf16 %v1025, %v1022
      %v1044 = vunpack.c.l.b16 %v1028
      %v1045 = vunpack.c.h.b16 %v1028
      %v1046 = vunpack.c.l.b16 %v1029
      %v1047 = vunpack.c.h.b16 %v1029
      %v1048 = vunpack.c.l.b16 %v1030
      %v1049 = vunpack.c.h.b16 %v1030
      %v1050 = vunpack.c.l.b16 %v1031
      %v1051 = vunpack.c.h.b16 %v1031
      %v1052 = vunpack.c.l.b16 %v1032
      %v1053 = vunpack.c.h.b16 %v1032
      %v1054 = vunpack.c.l.b16 %v1033
      %v1055 = vunpack.c.h.b16 %v1033
      %v1056 = vunpack.c.l.b16 %v1034
      %v1057 = vunpack.c.h.b16 %v1034
      %v1058 = vunpack.c.l.b16 %v1035
      %v1059 = vunpack.c.h.b16 %v1035
      %v1060 = vpack.c.b16 %v1044, %v1044
      %v1061 = vpack.c.b16 %v1045, %v1045
      %v1062 = vpack.c.b16 %v1046, %v1046
      %v1063 = vpack.c.b16 %v1047, %v1047
      %v1064 = vpack.c.b16 %v1048, %v1048
      %v1065 = vpack.c.b16 %v1049, %v1049
      %v1066 = vpack.c.b16 %v1050, %v1050
      %v1067 = vpack.c.b16 %v1051, %v1051
      %v1068 = vpack.c.b16 %v1052, %v1052
      %v1069 = vpack.c.b16 %v1053, %v1053
      %v1070 = vpack.c.b16 %v1054, %v1054
      %v1071 = vpack.c.b16 %v1055, %v1055
      %v1072 = vpack.c.b16 %v1056, %v1056
      %v1073 = vpack.c.b16 %v1057, %v1057
      %v1074 = vpack.c.b16 %v1058, %v1058
      %v1075 = vpack.c.b16 %v1059, %v1059
      %1092 = vst.msk [vmem:[%s533] sm:$0xf] %vm811, %v1060
      %1093 = vst.msk [vmem:[%s533 + $0x4] sm:$0xf] %vm811, %v1061
      %1094 = vst.msk [vmem:[%s533 + $0x8] sm:$0xf] %vm811, %v1062
      %1095 = vst.msk [vmem:[%s533 + $0xc] sm:$0xf] %vm811, %v1063
      %1096 = vst.msk [vmem:[%s533 + $0x10] sm:$0xf] %vm811, %v1064
      %1097 = vst.msk [vmem:[%s533 + $0x14] sm:$0xf] %vm811, %v1065
      %1098 = vst.msk [vmem:[%s533 + $0x18] sm:$0xf] %vm811, %v1066
      %1099 = vst.msk [vmem:[%s533 + $0x1c] sm:$0xf] %vm811, %v1067
      %1100 = vst.msk [vmem:[%s533 + $0x20] sm:$0xf] %vm811, %v1068
      %1101 = vst.msk [vmem:[%s533 + $0x24] sm:$0xf] %vm811, %v1069
      %1102 = vst.msk [vmem:[%s533 + $0x28] sm:$0xf] %vm811, %v1070
      %1103 = vst.msk [vmem:[%s533 + $0x2c] sm:$0xf] %vm811, %v1071
      %1104 = vst.msk [vmem:[%s533 + $0x30] sm:$0xf] %vm811, %v1072
      %1105 = vst.msk [vmem:[%s533 + $0x34] sm:$0xf] %vm811, %v1073
      %1106 = vst.msk [vmem:[%s533 + $0x38] sm:$0xf] %vm811, %v1074
      %1107 = vst.msk [vmem:[%s533 + $0x3c] sm:$0xf] %vm811, %v1075
      %v1108 = vld [vmem:[%s513] sm:$0xf]
      %v1109 = vld [vmem:[%s513 + $0x4] sm:$0xf]
      %v1110 = vld [vmem:[%s513 + $0x8] sm:$0xf]
      %v1111 = vld [vmem:[%s513 + $0xc] sm:$0xf]
      %v1112 = vld [vmem:[%s513 + $0x10] sm:$0xf]
      %v1113 = vld [vmem:[%s513 + $0x14] sm:$0xf]
      %v1114 = vld [vmem:[%s513 + $0x18] sm:$0xf]
      %v1115 = vld [vmem:[%s513 + $0x1c] sm:$0xf]
      %v1116 = vld [vmem:[%s513 + $0x20] sm:$0xf]
      %v1117 = vld [vmem:[%s513 + $0x24] sm:$0xf]
      %v1118 = vld [vmem:[%s513 + $0x28] sm:$0xf]
      %v1119 = vld [vmem:[%s513 + $0x2c] sm:$0xf]
      %v1120 = vld [vmem:[%s513 + $0x30] sm:$0xf]
      %v1121 = vld [vmem:[%s513 + $0x34] sm:$0xf]
      %v1122 = vld [vmem:[%s513 + $0x38] sm:$0xf]
      %v1123 = vld [vmem:[%s513 + $0x3c] sm:$0xf]
      %v1124 = vld [vmem:[%s7] sm:$0xf]
      %v1125 = vld [vmem:[%s7 + $0x4] sm:$0xf]
      %v1126 = vld [vmem:[%s7 + $0x8] sm:$0xf]
      %v1127 = vld [vmem:[%s7 + $0xc] sm:$0xf]
      %v1128 = vld [vmem:[%s8] sm:$0x1]
      %v1130 = vlaneseq
      %v1131 = vshrl.u32 %v1130, 7
      %v1132 = vsub.s32 0, %v1131
      %v1133 = vrot.slane %v1128, %v1132
      %v1151 = vunpack.c.l.b16 %v1108
      %v1152 = vunpack.c.l.b16 %v1109
      %v1153 = vunpack.c.l.b16 %v1110
      %v1154 = vunpack.c.l.b16 %v1111
      %v1155 = vunpack.c.l.b16 %v1112
      %v1156 = vunpack.c.l.b16 %v1113
      %v1157 = vunpack.c.l.b16 %v1114
      %v1158 = vunpack.c.l.b16 %v1115
      %v1159 = vunpack.c.l.b16 %v1116
      %v1160 = vunpack.c.l.b16 %v1117
      %v1161 = vunpack.c.l.b16 %v1118
      %v1162 = vunpack.c.l.b16 %v1119
      %v1163 = vunpack.c.l.b16 %v1120
      %v1164 = vunpack.c.l.b16 %v1121
      %v1165 = vunpack.c.l.b16 %v1122
      %v1166 = vunpack.c.l.b16 %v1123
      %v1167 = vpack.c.b16 %v1152, %v1151
      %v1168 = vpack.c.b16 %v1154, %v1153
      %v1169 = vpack.c.b16 %v1156, %v1155
      %v1170 = vpack.c.b16 %v1158, %v1157
      %v1171 = vpack.c.b16 %v1160, %v1159
      %v1172 = vpack.c.b16 %v1162, %v1161
      %v1173 = vpack.c.b16 %v1164, %v1163
      %v1174 = vpack.c.b16 %v1166, %v1165
      %v1179 = vunpack.c.l.b16 %v1124
      %v1180 = vunpack.c.l.b16 %v1125
      %v1181 = vunpack.c.l.b16 %v1126
      %v1182 = vunpack.c.l.b16 %v1127
      %v1183 = vpack.c.b16 %v1180, %v1179
      %v1184 = vpack.c.b16 %v1182, %v1181
      %v1188 = vsel %vm625, %v1167, 0
      %v1191 = vsel %vm625, %v1168, 0
      %v1194 = vsel %vm625, %v1169, 0
      %v1197 = vsel %vm625, %v1170, 0
      %v1200 = vsel %vm625, %v1171, 0
      %v1203 = vsel %vm625, %v1172, 0
      %v1206 = vsel %vm625, %v1173, 0
      %v1209 = vsel %vm625, %v1174, 0
      %1211 = vmatprep.subr.bf16.mxu0 0
      %1212 = vmatpush1.bf16.msra.mxu0 %v1183
      %1213 = vmatprep.subr.bf16.mxu0 0
      %1214 = vmatpush1.bf16.msra.mxu0 %v1184
      %1215 = vmatprep.subr.bf16.mxu0 0
      %1216 = vmatpush1.bf16.msra.mxu0 0
      %1217 = vmatprep.subr.bf16.mxu0 0
      %1218 = vmatpush1.bf16.msra.mxu0 0
      %1219 = vmatprep.subr.bf16.mxu0 0
      %1220 = vmatpush1.bf16.msra.mxu0 0
      %1221 = vmatprep.subr.bf16.mxu0 0
      %1222 = vmatpush1.bf16.msra.mxu0 0
      %1223 = vmatprep.subr.bf16.mxu0 0
      %1224 = vmatpush1.bf16.msra.mxu0 0
      %1225 = vmatprep.subr.bf16.mxu0 0
      %1226 = vmatpush1.bf16.msra.mxu0 0
      %1227 = vmatprep.subr.bf16.mxu0 0
      %1228 = vmatpush1.bf16.msra.mxu0 0
      %1229 = vmatprep.subr.bf16.mxu0 0
      %1230 = vmatpush1.bf16.msra.mxu0 0
      %1231 = vmatprep.subr.bf16.mxu0 0
      %1232 = vmatpush1.bf16.msra.mxu0 0
      %1233 = vmatprep.subr.bf16.mxu0 0
      %1234 = vmatpush1.bf16.msra.mxu0 0
      %1235 = vmatprep.subr.bf16.mxu0 0
      %1236 = vmatpush1.bf16.msra.mxu0 0
      %1237 = vmatprep.subr.bf16.mxu0 0
      %1238 = vmatpush1.bf16.msra.mxu0 0
      %1239 = vmatprep.subr.bf16.mxu0 0
      %1240 = vmatpush1.bf16.msra.mxu0 0
      %1241 = vmatprep.subr.bf16.mxu0 0
      %1242 = vmatpush1.bf16.msra.mxu0 0
      %1243 = vmatprep.mubr.bf16.mxu0 0
      %1244 = vmatmul.mubr.bf16.gmra.mrb[0].mxu0 %v1188
      %v1245 = vpop.f32.mrb[0].mxu0
      %v1246 = vadd.f32 %v1133, %v1245
      %v1247 = vpop.f32.mrb[0].mxu0
      %v1248 = vpop.f32.mrb[0].mxu0
      %v1249 = vadd.f32 %v1133, %v1248
      %v1250 = vpop.f32.mrb[0].mxu0
      %1251 = vmatprep.mubr.bf16.mxu0 0
      %1252 = vmatmul.mubr.bf16.gmra.mrb[0].mxu0 %v1191
      %v1253 = vpop.f32.mrb[0].mxu0
      %v1254 = vadd.f32 %v1133, %v1253
      %v1255 = vpop.f32.mrb[0].mxu0
      %v1256 = vpop.f32.mrb[0].mxu0
      %v1257 = vadd.f32 %v1133, %v1256
      %v1258 = vpop.f32.mrb[0].mxu0
      %1259 = vmatprep.mubr.bf16.mxu0 0
      %1260 = vmatmul.mubr.bf16.gmra.mrb[0].mxu0 %v1194
      %v1261 = vpop.f32.mrb[0].mxu0
      %v1262 = vadd.f32 %v1133, %v1261
      %v1263 = vpop.f32.mrb[0].mxu0
      %v1264 = vpop.f32.mrb[0].mxu0
      %v1265 = vadd.f32 %v1133, %v1264
      %v1266 = vpop.f32.mrb[0].mxu0
      %1267 = vmatprep.mubr.bf16.mxu0 0
      %1268 = vmatmul.mubr.bf16.gmra.mrb[0].mxu0 %v1197
      %v1269 = vpop.f32.mrb[0].mxu0
      %v1270 = vadd.f32 %v1133, %v1269
      %v1271 = vpop.f32.mrb[0].mxu0
      %v1272 = vpop.f32.mrb[0].mxu0
      %v1273 = vadd.f32 %v1133, %v1272
      %v1274 = vpop.f32.mrb[0].mxu0
      %1275 = vmatprep.mubr.bf16.mxu0 0
      %1276 = vmatmul.mubr.bf16.gmra.mrb[0].mxu0 %v1200
      %v1277 = vpop.f32.mrb[0].mxu0
      %v1278 = vadd.f32 %v1133, %v1277
      %v1279 = vpop.f32.mrb[0].mxu0
      %v1280 = vpop.f32.mrb[0].mxu0
      %v1281 = vadd.f32 %v1133, %v1280
      %v1282 = vpop.f32.mrb[0].mxu0
      %1283 = vmatprep.mubr.bf16.mxu0 0
      %1284 = vmatmul.mubr.bf16.gmra.mrb[0].mxu0 %v1203
      %v1285 = vpop.f32.mrb[0].mxu0
      %v1286 = vadd.f32 %v1133, %v1285
      %v1287 = vpop.f32.mrb[0].mxu0
      %v1288 = vpop.f32.mrb[0].mxu0
      %v1289 = vadd.f32 %v1133, %v1288
      %v1290 = vpop.f32.mrb[0].mxu0
      %1291 = vmatprep.mubr.bf16.mxu0 0
      %1292 = vmatmul.mubr.bf16.gmra.mrb[0].mxu0 %v1206
      %v1293 = vpop.f32.mrb[0].mxu0
      %v1294 = vadd.f32 %v1133, %v1293
      %v1295 = vpop.f32.mrb[0].mxu0
      %v1296 = vpop.f32.mrb[0].mxu0
      %v1297 = vadd.f32 %v1133, %v1296
      %v1298 = vpop.f32.mrb[0].mxu0
      %1299 = vmatprep.mubr.bf16.mxu0 0
      %1300 = vmatmul.mubr.bf16.gmra.mrb[0].mxu0 %v1209
      %v1301 = vpop.f32.mrb[0].mxu0
      %v1302 = vadd.f32 %v1133, %v1301
      %v1303 = vpop.f32.mrb[0].mxu0
      %v1304 = vpop.f32.mrb[0].mxu0
      %v1305 = vadd.f32 %v1133, %v1304
      %v1306 = vpop.f32.mrb[0].mxu0
      %1307 = vdwg.mxu0
      %v1308 = vpack.c.bf16 %v1249, %v1246
      %v1309 = vpack.c.bf16 %v1257, %v1254
      %v1310 = vpack.c.bf16 %v1265, %v1262
      %v1311 = vpack.c.bf16 %v1273, %v1270
      %v1312 = vpack.c.bf16 %v1281, %v1278
      %v1313 = vpack.c.bf16 %v1289, %v1286
      %v1314 = vpack.c.bf16 %v1297, %v1294
      %v1315 = vpack.c.bf16 %v1305, %v1302
      %v1324 = vunpack.c.l.b16 %v1308
      %v1325 = vunpack.c.h.b16 %v1308
      %v1326 = vunpack.c.l.b16 %v1309
      %v1327 = vunpack.c.h.b16 %v1309
      %v1328 = vunpack.c.l.b16 %v1310
      %v1329 = vunpack.c.h.b16 %v1310
      %v1330 = vunpack.c.l.b16 %v1311
      %v1331 = vunpack.c.h.b16 %v1311
      %v1332 = vunpack.c.l.b16 %v1312
      %v1333 = vunpack.c.h.b16 %v1312
      %v1334 = vunpack.c.l.b16 %v1313
      %v1335 = vunpack.c.h.b16 %v1313
      %v1336 = vunpack.c.l.b16 %v1314
      %v1337 = vunpack.c.h.b16 %v1314
      %v1338 = vunpack.c.l.b16 %v1315
      %v1339 = vunpack.c.h.b16 %v1315
      %v1340 = vpack.c.b16 %v1324, %v1324
      %v1341 = vpack.c.b16 %v1325, %v1325
      %v1342 = vpack.c.b16 %v1326, %v1326
      %v1343 = vpack.c.b16 %v1327, %v1327
      %v1344 = vpack.c.b16 %v1328, %v1328
      %v1345 = vpack.c.b16 %v1329, %v1329
      %v1346 = vpack.c.b16 %v1330, %v1330
      %v1347 = vpack.c.b16 %v1331, %v1331
      %v1348 = vpack.c.b16 %v1332, %v1332
      %v1349 = vpack.c.b16 %v1333, %v1333
      %v1350 = vpack.c.b16 %v1334, %v1334
      %v1351 = vpack.c.b16 %v1335, %v1335
      %v1352 = vpack.c.b16 %v1336, %v1336
      %v1353 = vpack.c.b16 %v1337, %v1337
      %v1354 = vpack.c.b16 %v1338, %v1338
      %v1355 = vpack.c.b16 %v1339, %v1339
      %1372 = vst.msk [vmem:[%s543] sm:$0xf] %vm811, %v1340
      %1373 = vst.msk [vmem:[%s543 + $0x4] sm:$0xf] %vm811, %v1341
      %1374 = vst.msk [vmem:[%s543 + $0x8] sm:$0xf] %vm811, %v1342
      %1375 = vst.msk [vmem:[%s543 + $0xc] sm:$0xf] %vm811, %v1343
      %1376 = vst.msk [vmem:[%s543 + $0x10] sm:$0xf] %vm811, %v1344
      %1377 = vst.msk [vmem:[%s543 + $0x14] sm:$0xf] %vm811, %v1345
      %1378 = vst.msk [vmem:[%s543 + $0x18] sm:$0xf] %vm811, %v1346
      %1379 = vst.msk [vmem:[%s543 + $0x1c] sm:$0xf] %vm811, %v1347
      %1380 = vst.msk [vmem:[%s543 + $0x20] sm:$0xf] %vm811, %v1348
      %1381 = vst.msk [vmem:[%s543 + $0x24] sm:$0xf] %vm811, %v1349
      %1382 = vst.msk [vmem:[%s543 + $0x28] sm:$0xf] %vm811, %v1350
      %1383 = vst.msk [vmem:[%s543 + $0x2c] sm:$0xf] %vm811, %v1351
      %1384 = vst.msk [vmem:[%s543 + $0x30] sm:$0xf] %vm811, %v1352
      %1385 = vst.msk [vmem:[%s543 + $0x34] sm:$0xf] %vm811, %v1353
      %1386 = vst.msk [vmem:[%s543 + $0x38] sm:$0xf] %vm811, %v1354
      %1387 = vst.msk [vmem:[%s543 + $0x3c] sm:$0xf] %vm811, %v1355
      %s1388 = smul.u32 16, %s28
      %p1389 = scmp.lt.s32.totalorder %s27, 1
      %s1390 = scalar_select %p1389, %s27, 1
      %p1391 = scmp.lt.s32.totalorder %s1388, 15
      %s1392 = scalar_select %p1391, %s1388, 15
      %s1393 = smul.addr %s1390, 16
      %s1394 = sadd.s32 %s1392, %s1393
      %s1395 = smul.addr %s1394, 4
      %s1396 = scalar_lea.vmem %s9, %s1395
      %s1397 = smul.u32 16, %s28
      %p1398 = scmp.lt.s32.totalorder %s27, 1
      %s1399 = scalar_select %p1398, %s27, 1
      %p1400 = scmp.lt.s32.totalorder %s1397, 15
      %s1401 = scalar_select %p1400, %s1397, 15
      %s1402 = smul.addr %s1399, 16
      %s1403 = sadd.s32 %s1401, %s1402
      %s1404 = smul.addr %s1403, 4
      %s1405 = scalar_lea.vmem %s10, %s1404
      %s1406 = smul.u32 16, %s28
      %p1407 = scmp.lt.s32.totalorder %s27, 1
      %s1408 = scalar_select %p1407, %s27, 1
      %p1409 = scmp.lt.s32.totalorder %s1406, 15
      %s1410 = scalar_select %p1409, %s1406, 15
      %s1411 = smul.addr %s1408, 16
      %s1412 = sadd.s32 %s1410, %s1411
      %s1413 = smul.addr %s1412, 4
      %s1414 = scalar_lea.vmem %s11, %s1413
      // Predicated region
      $region57: #{tpu_custom_call.1} parent=55 // pred_check
        %p1415 = pneg %p265
      $region58: #{tpu_custom_call.1} parent=55 // pred_check_branch
        %1417 = sbr.rel (%p1415) target = $region60
      $region59: #{tpu_custom_call.1} parent=55 // pred_region
        %s1418 = smul.u32 16, %s28
      $region60: #{tpu_custom_call.1} parent=55 // pred_fallthru
        _
      // Predicated region
      $region61: #{tpu_custom_call.1} parent=55 // pred_check
        %p1419 = pneg %p293
      $region62: #{tpu_custom_call.1} parent=55 // pred_check_branch
        %1421 = sbr.rel (%p1419) target = $region64
      $region63: #{tpu_custom_call.1} parent=55 // pred_region
        %s1422 = smul.u32 16, %s28
      $region64: #{tpu_custom_call.1} parent=55 // pred_fallthru
        _
      // Predicated region
      $region65: #{tpu_custom_call.1} parent=55 // pred_check
        %p1423 = pneg %p321
      $region66: #{tpu_custom_call.1} parent=55 // pred_check_branch
        %1425 = sbr.rel (%p1423) target = $region68
      $region67: #{tpu_custom_call.1} parent=55 // pred_region
        %s1426 = smul.u32 16, %s28
      $region68: #{tpu_custom_call.1} parent=55 // pred_fallthru
        _
    $region56: #{tpu_custom_call.1} parent=5 // pred_fallthru
      _
    %p1427 = scmp.le.s32.totalorder 2, %s18
    // Predicated region
    $region69: #{tpu_custom_call.1} parent=5 // pred_check
      %p1428 = pneg %p1427
    $region70: #{tpu_custom_call.1} parent=5 // pred_check_branch
      %1430 = sbr.rel (%p1428) target = $region72
    $region71: #{tpu_custom_call.1} parent=5 // pred_region
      %s1431 = ssub.s32 %s18, 2
      // Predicated region
      $region73: #{tpu_custom_call.1} parent=71 // pred_check
        %p1432 = pneg %p271
      $region74: #{tpu_custom_call.1} parent=71 // pred_check_branch
        %1434 = sbr.rel (%p1432) target = $region76
      $region75: #{tpu_custom_call.1} parent=71 // pred_region
        %s1435 = smul.u32 16, %s30
        %p1436 = scmp.lt.s32.totalorder %s29, 1
        %s1437 = scalar_select %p1436, %s29, 1
        %p1438 = scmp.lt.s32.totalorder %s1435, 15
        %s1439 = scalar_select %p1438, %s1435, 15
        %s1440 = smul.addr %s1437, 16
        %s1441 = sadd.s32 %s1439, %s1440
        %s1442 = smul.addr %s1441, 4
        %s1443 = scalar_lea.vmem %s9, %s1442
      $region76: #{tpu_custom_call.1} parent=71 // pred_fallthru
        _
      // Predicated region
      $region77: #{tpu_custom_call.1} parent=71 // pred_check
        %p1444 = pneg %p299
      $region78: #{tpu_custom_call.1} parent=71 // pred_check_branch
        %1446 = sbr.rel (%p1444) target = $region80
      $region79: #{tpu_custom_call.1} parent=71 // pred_region
        %s1447 = smul.u32 16, %s30
        %p1448 = scmp.lt.s32.totalorder %s29, 1
        %s1449 = scalar_select %p1448, %s29, 1
        %p1450 = scmp.lt.s32.totalorder %s1447, 15
        %s1451 = scalar_select %p1450, %s1447, 15
        %s1452 = smul.addr %s1449, 16
        %s1453 = sadd.s32 %s1451, %s1452
        %s1454 = smul.addr %s1453, 4
        %s1455 = scalar_lea.vmem %s10, %s1454
      $region80: #{tpu_custom_call.1} parent=71 // pred_fallthru
        _
      // Predicated region
      $region81: #{tpu_custom_call.1} parent=71 // pred_check
        %p1456 = pneg %p327
      $region82: #{tpu_custom_call.1} parent=71 // pred_check_branch
        %1458 = sbr.rel (%p1456) target = $region84
      $region83: #{tpu_custom_call.1} parent=71 // pred_region
        %s1459 = smul.u32 16, %s30
        %p1460 = scmp.lt.s32.totalorder %s29, 1
        %s1461 = scalar_select %p1460, %s29, 1
        %p1462 = scmp.lt.s32.totalorder %s1459, 15
        %s1463 = scalar_select %p1462, %s1459, 15
        %s1464 = smul.addr %s1461, 16
        %s1465 = sadd.s32 %s1463, %s1464
        %s1466 = smul.addr %s1465, 4
        %s1467 = scalar_lea.vmem %s11, %s1466
      $region84: #{tpu_custom_call.1} parent=71 // pred_fallthru
        _
    $region72: #{tpu_custom_call.1} parent=5 // pred_fallthru
      _
  $region6: #{tpu_custom_call.1} parent=0 // loop_footer
    %s22 = sadd.s32 1, %s18
  $region7: #{tpu_custom_call.1} parent=0 // loop_footer_branch
    %17 = sbr.rel target = $region3
  $region8: #{tpu_custom_call.1} parent=0 // loop_exit
    _

</llo_original>
